<compile_context>
chip_gen: v7x
topology: tpu7x:2x2x1
jax: 0.10.0
libtpu: 0.0.40
codegen_flags: <defaults>
</compile_context>

<pallas_src>
import jax
import jax.numpy as jnp
from jax import lax
from jax.experimental import pallas as pl
from jax.experimental.pallas import tpu as pltpu


def _skipgram_batch_kernel(tgt_ids_ref, ctx_ids_ref, w_ref, c_ref, o_ref):
    vocab = w_ref.shape[0]
    tb = o_ref.shape[1]

    tgt_ids = tgt_ids_ref[...]                      # (1, TB) int32, batch on lanes
    ctx_ids = ctx_ids_ref[...]                      # (1, TB) int32

    # One-hot selectors with the batch kept on the lane axis: onehot[v, b] = (v == id[b]).
    row_iota = lax.broadcasted_iota(jnp.int32, (vocab, tb), 0)      # (V, TB)
    onehot_t = (row_iota == tgt_ids).astype(w_ref.dtype)            # (V, TB)
    onehot_c = (row_iota == ctx_ids).astype(c_ref.dtype)            # (V, TB)

    # Gather the selected rows via a small MXU matmul, contracting the vocab
    # axis of both operands:  emb_T[e, b] = sum_v table[v, e] * onehot[v, b].
    dn = (((0,), (0,)), ((), ()))
    tgt_emb_t = lax.dot_general(w_ref[...], onehot_t, dn,
                                preferred_element_type=jnp.float32,
                                precision=lax.Precision.HIGHEST)    # (E, TB) f32
    ctx_emb_t = lax.dot_general(c_ref[...], onehot_c, dn,
                                preferred_element_type=jnp.float32,
                                precision=lax.Precision.HIGHEST)    # (E, TB) f32

    # Per-pair dot product: VPU multiply + XLU sublane reduce; sigmoid on EUP.
    score = jnp.sum(tgt_emb_t * ctx_emb_t, axis=0, keepdims=True)   # (1, TB)
    o_ref[...] = jax.nn.sigmoid(score)                              # lane-dense store


def skipgram_ns_forward_batched(tgt_ids, ctx_ids, w_weight, c_weight, *,
                                block_b=128):
    """Score a batch of (tgt, ctx) pairs: sigmoid(<w[tgt_b], c[ctx_b]>) for each b.

    Args:
      tgt_ids, ctx_ids: (B,) int32 word ids.
      w_weight, c_weight: (vocab_size, embed_size) embedding tables (f32 or bf16).
    Returns:
      (B,) f32 sigmoid scores.
    """
    vocab_size, embed_size = w_weight.shape
    tgt_ids = jnp.asarray(tgt_ids, jnp.int32).reshape(-1)
    ctx_ids = jnp.asarray(ctx_ids, jnp.int32).reshape(-1)
    b = tgt_ids.shape[0]

    # Pad the batch up to a multiple of the (lane-dense) tile size.
    padded_b = pl.cdiv(b, block_b) * block_b
    if padded_b != b:
        pad = padded_b - b
        tgt_ids = jnp.pad(tgt_ids, (0, pad))       # id 0 is a valid row; padded
        ctx_ids = jnp.pad(ctx_ids, (0, pad))       # outputs are sliced off below.

    tgt_ids2 = tgt_ids.reshape(1, padded_b)
    ctx_ids2 = ctx_ids.reshape(1, padded_b)

    out = pl.pallas_call(
        _skipgram_batch_kernel,
        out_shape=jax.ShapeDtypeStruct((1, padded_b), jnp.float32),
        grid=(padded_b // block_b,),
        in_specs=[
            pl.BlockSpec((1, block_b), lambda i: (0, i)),
            pl.BlockSpec((1, block_b), lambda i: (0, i)),
            # Full-table VMEM blocks with constant index_map: DMA'd once,
            # resident for every grid step (tables are tiny for this demo).
            # TODO(synk): for large vocabularies that do not fit VMEM, switch
            # these to a scalar-prefetch pl.Element row-gather path.
            pl.BlockSpec((vocab_size, embed_size), lambda i: (0, 0)),
            pl.BlockSpec((vocab_size, embed_size), lambda i: (0, 0)),
        ],
        out_specs=pl.BlockSpec((1, block_b), lambda i: (0, i)),
        compiler_params=pltpu.CompilerParams(
            dimension_semantics=("parallel",)),
    )(tgt_ids2, ctx_ids2, w_weight, c_weight)

    return out[0, :b]


def skipgram_ns_forward(tgt_word, ctx_word, w_weight, c_weight):
    """Single-pair forward matching the PyTorch module's signature/semantics.

    NOTE: for a truly single pair per call, a plain-jnp gather+dot+sigmoid is
    faster than any pallas_call; this wrapper exists so the module's exact
    interface runs through the same kernel (batch of 1, padded to one tile).
    """
    out = skipgram_ns_forward_batched(
        jnp.reshape(jnp.asarray(tgt_word, jnp.int32), (1,)),
        jnp.reshape(jnp.asarray(ctx_word, jnp.int32), (1,)),
        w_weight, c_weight)
    return out[0]


def _xavier_normal(key, shape):
    fan_out, fan_in = shape[0], shape[1]   # matches torch.nn.init.xavier_normal_
    std = (2.0 / (fan_in + fan_out)) ** 0.5
    return std * jax.random.normal(key, shape, dtype=jnp.float32)


if __name__ == "__main__":
    vocab_size, embed_size = 64, 128

    key = jax.random.PRNGKey(0)
    kw, kc, kt, kx = jax.random.split(key, 4)
    w_weight = _xavier_normal(kw, (vocab_size, embed_size))
    c_weight = _xavier_normal(kc, (vocab_size, embed_size))

    # --- Batched path (the performant API): 256 (tgt, ctx) pairs -> 2 grid steps.
    batch = 256
    tgt_ids = jax.random.randint(kt, (batch,), 0, vocab_size, dtype=jnp.int32)
    ctx_ids = jax.random.randint(kx, (batch,), 0, vocab_size, dtype=jnp.int32)

    out = skipgram_ns_forward_batched(tgt_ids, ctx_ids, w_weight, c_weight)
    out = jax.block_until_ready(out)

    ref = jax.nn.sigmoid(jnp.sum(w_weight[tgt_ids] * c_weight[ctx_ids], axis=-1))
    assert out.shape == (batch,)
    assert jnp.allclose(out, ref, atol=1e-3, rtol=1e-3), float(
        jnp.max(jnp.abs(out - ref)))

    # --- Scalar path (original module semantics): sigmoid(dot(w[3], c[7])).
    s = skipgram_ns_forward(jnp.int32(3), jnp.int32(7), w_weight, c_weight)
    s = jax.block_until_ready(s)
    s_ref = jax.nn.sigmoid(jnp.dot(w_weight[3], c_weight[7]))
    assert jnp.allclose(s, s_ref, atol=1e-3, rtol=1e-3), (float(s), float(s_ref))

    print("KERNEL_OK")
</pallas_src>

<mosaic_0001>
module attributes {stable_mosaic.version = 11 : i64} {
  func.func @_skipgram_batch_kernel(%arg0: i32, %arg1: memref<1x128xi32, #tpu.memory_space<vmem>>, %arg2: memref<1x128xi32, #tpu.memory_space<vmem>>, %arg3: memref<64x128xf32, #tpu.memory_space<vmem>>, %arg4: memref<64x128xf32, #tpu.memory_space<vmem>>, %arg5: memref<1x128xf32, #tpu.memory_space<vmem>>) attributes {dimension_semantics = [#tpu.dimension_semantics<parallel>], iteration_bounds = array<i64: 2>, scalar_prefetch = 0 : i64, scratch_operands = 0 : i64, tpu.core_type = #tpu.core_type<tc>, window_params = [{transform_indices = @transform_0, window_bounds = array<i64: 1, 128>}, {transform_indices = @transform_1, window_bounds = array<i64: 1, 128>}, {pipeline_mode = #tpu.pipeline_mode<synchronous>, transform_indices = @transform_2, window_bounds = array<i64: 64, 128>}, {pipeline_mode = #tpu.pipeline_mode<synchronous>, transform_indices = @transform_3, window_bounds = array<i64: 64, 128>}, {transform_indices = @transform_4, window_bounds = array<i64: 1, 128>}]} {
    %c0 = arith.constant 0 : index
    %c0_0 = arith.constant 0 : index
    %0 = vector.load %arg1[%c0, %c0_0] : memref<1x128xi32, #tpu.memory_space<vmem>>, vector<1x128xi32>
    %c0_1 = arith.constant 0 : index
    %c0_2 = arith.constant 0 : index
    %1 = vector.load %arg2[%c0_1, %c0_2] : memref<1x128xi32, #tpu.memory_space<vmem>>, vector<1x128xi32>
    %2 = tpu.iota {dimensions = array<i32: 0>} : vector<64x128xi32>
    %3 = vector.broadcast %0 : vector<1x128xi32> to vector<64x128xi32>
    %4 = arith.cmpi eq, %2, %3 : vector<64x128xi32>
    %5 = arith.extui %4 : vector<64x128xi1> to vector<64x128xi32>
    %6 = arith.sitofp %5 : vector<64x128xi32> to vector<64x128xf32>
    %7 = vector.broadcast %1 : vector<1x128xi32> to vector<64x128xi32>
    %8 = arith.cmpi eq, %2, %7 : vector<64x128xi32>
    %9 = arith.extui %8 : vector<64x128xi1> to vector<64x128xi32>
    %10 = arith.sitofp %9 : vector<64x128xi32> to vector<64x128xf32>
    %c0_3 = arith.constant 0 : index
    %c0_4 = arith.constant 0 : index
    %11 = vector.load %arg3[%c0_3, %c0_4] : memref<64x128xf32, #tpu.memory_space<vmem>>, vector<64x128xf32>
    %cst = arith.constant dense<0.000000e+00> : vector<128x128xf32>
    %12 = tpu.matmul %11, %6, %cst {dimension_numbers = #tpu.dot_dimension_numbers<[0], [0], [1], [1], [0, 1, 1, 1], [], []>, precision = #tpu.contract_precision<fp32>} : vector<64x128xf32>, vector<64x128xf32>, vector<128x128xf32> -> vector<128x128xf32>
    %c0_5 = arith.constant 0 : index
    %c0_6 = arith.constant 0 : index
    %13 = vector.load %arg4[%c0_5, %c0_6] : memref<64x128xf32, #tpu.memory_space<vmem>>, vector<64x128xf32>
    %cst_7 = arith.constant dense<0.000000e+00> : vector<128x128xf32>
    %14 = tpu.matmul %13, %10, %cst_7 {dimension_numbers = #tpu.dot_dimension_numbers<[0], [0], [1], [1], [0, 1, 1, 1], [], []>, precision = #tpu.contract_precision<fp32>} : vector<64x128xf32>, vector<64x128xf32>, vector<128x128xf32> -> vector<128x128xf32>
    %15 = arith.mulf %12, %14 : vector<128x128xf32>
    %cst_8 = arith.constant dense<0.000000e+00> : vector<128xf32>
    %16 = vector.multi_reduction <add>, %15, %cst_8 [0] : vector<128x128xf32> to vector<128xf32>
    %17 = vector.shape_cast %16 : vector<128xf32> to vector<1x128xf32>
    %18 = arith.negf %17 : vector<1x128xf32>
    %19 = math.exp %18 : vector<1x128xf32>
    %cst_9 = arith.constant 1.000000e+00 : f32
    %20 = vector.broadcast %cst_9 : f32 to vector<1x128xf32>
    %21 = arith.addf %20, %19 : vector<1x128xf32>
    %22 = arith.divf %20, %21 : vector<1x128xf32>
    %c0_10 = arith.constant 0 : index
    %c0_11 = arith.constant 0 : index
    %23 = vector.load %arg5[%c0_10, %c0_11] : memref<1x128xf32, #tpu.memory_space<vmem>>, vector<1x128xf32>
    tpu.vector_store %arg5[%c0_10, %c0_11], %22 {strides = array<i32>} : memref<1x128xf32, #tpu.memory_space<vmem>>, vector<1x128xf32>,
    return
  }
  func.func @transform_0(%arg0: i32) -> (i32, i32) {
    %c0_i32 = arith.constant 0 : i32
    %c0_i32_0 = arith.constant 0 : i32
    return %c0_i32, %arg0 : i32, i32
  }
  func.func @transform_1(%arg0: i32) -> (i32, i32) {
    %c0_i32 = arith.constant 0 : i32
    %c0_i32_0 = arith.constant 0 : i32
    return %c0_i32, %arg0 : i32, i32
  }
  func.func @transform_2(%arg0: i32) -> (i32, i32) {
    %c0_i32 = arith.constant 0 : i32
    %c0_i32_0 = arith.constant 0 : i32
    %c0_i32_1 = arith.constant 0 : i32
    return %c0_i32, %c0_i32_0 : i32, i32
  }
  func.func @transform_3(%arg0: i32) -> (i32, i32) {
    %c0_i32 = arith.constant 0 : i32
    %c0_i32_0 = arith.constant 0 : i32
    %c0_i32_1 = arith.constant 0 : i32
    return %c0_i32, %c0_i32_0 : i32, i32
  }
  func.func @transform_4(%arg0: i32) -> (i32, i32) {
    %c0_i32 = arith.constant 0 : i32
    %c0_i32_0 = arith.constant 0 : i32
    return %c0_i32, %arg0 : i32, i32
  }
}

</mosaic_0001>

<llo_original>
// kernel: tpu_custom_call.1
$region0: #{tpu_custom_call.1}
  #allocation0 [shape = 'u32[]', space=smem, size = 0x4, offset = 0x4, fixed_abs, tag = 'smem constant byte address 0x4 - core index']
  #allocation1 [shape = 'u32[144,128]{1,0:T(1,128)}', space=vmem, size = 0x12000, scoped, tag = 'internal scratch']
  %s0 = inlined_call_operand.hbm [shape: s32[1,256], index: 0, kind: input, shape index: {}]
  %s1 = inlined_call_operand.vmem [shape: s32[1,256], index: 1, kind: input, shape index: {}]
  %s2 = inlined_call_operand.hbm [shape: f32[64,128], index: 2, kind: input, shape index: {}]
  %s3 = inlined_call_operand.hbm [shape: f32[64,128], index: 3, kind: input, shape index: {}]
  %s4 = inlined_call_operand.hbm [shape: f32[1,256], index: 4, kind: output, shape index: {}]
  %s5 = sld [smem:[#allocation0]]
  $region61: #{tpu_custom_call.1} parent=0
    _
  %s7 = ssub.s32 1, %s5
  %s8 = scalar_select 0, %s7, %s5
  $region1: #{tpu_custom_call.1} parent=0
    #allocation2 [shape = 'u8[1024]{0}', space=vmem, size = 0x400, scoped, tag = 'input window, operand 0']
    #allocation3 [shape = 's32[2]{0}', space=sflag, size = 0x8, scoped, tag = 'scoped memory for tpu_custom_call.1']
    #allocation4 [shape = 's32[2]{0}', space=sflag, size = 0x8, scoped, tag = 'scoped memory for tpu_custom_call.1']
    #allocation5 [shape = 'u8[32768]{0}', space=vmem, size = 0x8000, scoped, tag = 'input window, operand 2, single buffered']
    #allocation6 [shape = 's32[1]{0}', space=sflag, size = 0x4, scoped, tag = 'scoped memory for tpu_custom_call.1']
    #allocation7 [shape = 'u8[32768]{0}', space=vmem, size = 0x8000, scoped, tag = 'input window, operand 3, single buffered']
    #allocation8 [shape = 'u8[1024]{0}', space=vmem, size = 0x400, scoped, tag = 'output window, operand 0']
    %9 = vsyncpa [#allocation3], 0
    %s10 = scalar_lea.sflag [#allocation3], 1
    %11 = vsyncpa %s10, 0
    %12 = vsyncpa [#allocation6], 0
    %13 = vsyncpa [#allocation4], 0
    %s14 = scalar_lea.sflag [#allocation4], 1
    %15 = vsyncpa %s14, 0
    loop: start=0, step=1, limit=4
    $region2: #{tpu_custom_call.1} parent=1 // loop_pre_header
      _
    $region3: #{tpu_custom_call.1} parent=1 // loop_header
      %s17 = sphi 0, %s21
      %p18 = scmp.ge.s32.totalorder %s17, 4
      %s27 = sphi 0, %s29
      %s30 = sphi 0, %s27
      %s31 = sphi 0, %s30
      %s47 = sphi 0, %s31
      %s53 = sphi 0, %s55
      %s56 = sphi 0, %s53
      %s57 = sphi 0, %s56
      %s73 = sphi 0, %s57
      %s77 = sphi 0, %s77
      %s79 = sphi 0, %s77
      %s80 = sphi 0, %s79
      %s94 = sphi 0, %s80
      %s98 = sphi 0, %s98
      %s100 = sphi 0, %s98
      %s101 = sphi 0, %s100
      %s115 = sphi 0, %s101
      %s121 = sphi 0, %s123
      %s124 = sphi 0, %s121
      %s125 = sphi 0, %s124
      %s141 = sphi 0, %s125
    $region4: #{tpu_custom_call.1} parent=1 // loop_header_branch
      %20 = sbr.rel (%p18) target = $region8
    $region5: #{tpu_custom_call.1} parent=1 // loop_body
      %s22 = ssub.s32 %s17, 1
      %s23 = ssub.s32 %s17, 2
      %s24 = sadd.s32 %s17, 1
      %s25 = ssub.s32 %s17, %s24
      %p26 = scmp.eq.s32.totalorder %s25, 0
      %s28 = sadd.s32 %s27, 1
      %s29 = scalar_select %p26, %s27, %s28
      %p32 = pneg %p26
      %p33 = scmp.eq.s32.totalorder %s17, 1
      %p34 = por %p32, %p33
      %p35 = scmp.ne.s32.totalorder %s27, %s30
      %p36 = scmp.eq.s32.totalorder %s17, 0
      %p37 = por %p35, %p36
      %p38 = scmp.ne.s32.totalorder %s27, %s30
      %p39 = scmp.eq.s32.totalorder %s22, 1
      %p40 = por %p38, %p39
      %p41 = scmp.ne.s32.totalorder %s30, %s31
      %p42 = scmp.eq.s32.totalorder %s22, 0
      %p43 = por %p41, %p42
      %p44 = scmp.ne.s32.totalorder %s30, %s31
      %p45 = scmp.eq.s32.totalorder %s23, 1
      %p46 = por %p44, %p45
      %p48 = scmp.ne.s32.totalorder %s31, %s47
      %p49 = scmp.eq.s32.totalorder %s23, 0
      %p50 = por %p48, %p49
      %s51 = ssub.s32 %s17, %s24
      %p52 = scmp.eq.s32.totalorder %s51, 0
      %s54 = sadd.s32 %s53, 1
      %s55 = scalar_select %p52, %s53, %s54
      %p58 = pneg %p52
      %p59 = scmp.eq.s32.totalorder %s17, 1
      %p60 = por %p58, %p59
      %p61 = scmp.ne.s32.totalorder %s53, %s56
      %p62 = scmp.eq.s32.totalorder %s17, 0
      %p63 = por %p61, %p62
      %p64 = scmp.ne.s32.totalorder %s53, %s56
      %p65 = scmp.eq.s32.totalorder %s22, 1
      %p66 = por %p64, %p65
      %p67 = scmp.ne.s32.totalorder %s56, %s57
      %p68 = scmp.eq.s32.totalorder %s22, 0
      %p69 = por %p67, %p68
      %p70 = scmp.ne.s32.totalorder %s56, %s57
      %p71 = scmp.eq.s32.totalorder %s23, 1
      %p72 = por %p70, %p71
      %p74 = scmp.ne.s32.totalorder %s57, %s73
      %p75 = scmp.eq.s32.totalorder %s23, 0
      %p76 = por %p74, %p75
      %s78 = sadd.s32 %s77, 1
      %p81 = scmp.eq.s32.totalorder %s17, 1
      %p82 = scmp.ne.s32.totalorder %s77, %s79
      %p83 = scmp.eq.s32.totalorder %s17, 0
      %p84 = por %p82, %p83
      %p85 = scmp.ne.s32.totalorder %s77, %s79
      %p86 = scmp.eq.s32.totalorder %s22, 1
      %p87 = por %p85, %p86
      %p88 = scmp.ne.s32.totalorder %s79, %s80
      %p89 = scmp.eq.s32.totalorder %s22, 0
      %p90 = por %p88, %p89
      %p91 = scmp.ne.s32.totalorder %s79, %s80
      %p92 = scmp.eq.s32.totalorder %s23, 1
      %p93 = por %p91, %p92
      %p95 = scmp.ne.s32.totalorder %s80, %s94
      %p96 = scmp.eq.s32.totalorder %s23, 0
      %p97 = por %p95, %p96
      %s99 = sadd.s32 %s98, 1
      %p102 = scmp.eq.s32.totalorder %s17, 1
      %p103 = scmp.ne.s32.totalorder %s98, %s100
      %p104 = scmp.eq.s32.totalorder %s17, 0
      %p105 = por %p103, %p104
      %p106 = scmp.ne.s32.totalorder %s98, %s100
      %p107 = scmp.eq.s32.totalorder %s22, 1
      %p108 = por %p106, %p107
      %p109 = scmp.ne.s32.totalorder %s100, %s101
      %p110 = scmp.eq.s32.totalorder %s22, 0
      %p111 = por %p109, %p110
      %p112 = scmp.ne.s32.totalorder %s100, %s101
      %p113 = scmp.eq.s32.totalorder %s23, 1
      %p114 = por %p112, %p113
      %p116 = scmp.ne.s32.totalorder %s101, %s115
      %p117 = scmp.eq.s32.totalorder %s23, 0
      %p118 = por %p116, %p117
      %s119 = ssub.s32 %s17, %s24
      %p120 = scmp.eq.s32.totalorder %s119, 0
      %s122 = sadd.s32 %s121, 1
      %s123 = scalar_select %p120, %s121, %s122
      %p126 = pneg %p120
      %p127 = scmp.eq.s32.totalorder %s17, 1
      %p128 = por %p126, %p127
      %p129 = scmp.ne.s32.totalorder %s121, %s124
      %p130 = scmp.eq.s32.totalorder %s17, 0
      %p131 = por %p129, %p130
      %p132 = scmp.ne.s32.totalorder %s121, %s124
      %p133 = scmp.eq.s32.totalorder %s22, 1
      %p134 = por %p132, %p133
      %p135 = scmp.ne.s32.totalorder %s124, %s125
      %p136 = scmp.eq.s32.totalorder %s22, 0
      %p137 = por %p135, %p136
      %p138 = scmp.ne.s32.totalorder %s124, %s125
      %p139 = scmp.eq.s32.totalorder %s23, 1
      %p140 = por %p138, %p139
      %p142 = scmp.ne.s32.totalorder %s125, %s141
      %p143 = scmp.eq.s32.totalorder %s23, 0
      %p144 = por %p142, %p143
      %p145 = scmp.le.s32.totalorder 1, %s17
      %p146 = scmp.lt.s32.totalorder %s17, 3
      %p147 = pnand %p145, %p146
      %p148 = pneg %p147
      // Predicated region
      $region9: #{tpu_custom_call.1} parent=5 // pred_check
        _
      $region10: #{tpu_custom_call.1} parent=5 // pred_check_branch
        %150 = sbr.rel (%p147) target = $region12
      $region11: #{tpu_custom_call.1} parent=5 // pred_region
        %s151 = ssub.s32 %s17, 1
        // Predicated region
        $region13: #{tpu_custom_call.1} parent=11 // pred_check
          %p152 = pneg %p90
        $region14: #{tpu_custom_call.1} parent=11 // pred_check_branch
          %154 = sbr.rel (%p152) target = $region16
        $region15: #{tpu_custom_call.1} parent=11 // pred_region
          %s156 = ssub.s32 1024, 1024
          %157 = vsyncadd [#allocation6], %s156
          %s158 = sshll.u32 [#allocation5], 4
          %s159 = int_to_ptr.vmem [resolvable:$true] %s158
          %164 = dma.hbm_to_vmem [thread:$0]  %s2, 1024, %s159, [#allocation6], 128, 128, 8
        $region16: #{tpu_custom_call.1} parent=11 // pred_fallthru
          _
        // Predicated region
        $region17: #{tpu_custom_call.1} parent=11 // pred_check
          %p165 = pneg %p111
        $region18: #{tpu_custom_call.1} parent=11 // pred_check_branch
          %167 = sbr.rel (%p165) target = $region20
        $region19: #{tpu_custom_call.1} parent=11 // pred_region
          %s169 = ssub.s32 1024, 1024
          %170 = vsyncadd [#allocation6], %s169
          %s171 = sshll.u32 [#allocation7], 4
          %s172 = int_to_ptr.vmem [resolvable:$true] %s171
          %177 = dma.hbm_to_vmem [thread:$0]  %s3, 1024, %s172, [#allocation6], 128, 128, 8
        $region20: #{tpu_custom_call.1} parent=11 // pred_fallthru
          _
      $region12: #{tpu_custom_call.1} parent=5 // pred_fallthru
        _
      %p178 = scmp.lt.s32.totalorder %s17, 2
      // Predicated region
      $region21: #{tpu_custom_call.1} parent=5 // pred_check
        %p179 = pneg %p178
      $region22: #{tpu_custom_call.1} parent=5 // pred_check_branch
        %181 = sbr.rel (%p179) target = $region24
      $region23: #{tpu_custom_call.1} parent=5 // pred_region
        // Predicated region
        $region25: #{tpu_custom_call.1} parent=23 // pred_check
          %p182 = pneg %p37
        $region26: #{tpu_custom_call.1} parent=23 // pred_check_branch
          %184 = sbr.rel (%p182) target = $region28
        $region27: #{tpu_custom_call.1} parent=23 // pred_region
          %s185 = sand.u32 %s27, 1
          %s186 = scalar_lea.sflag [#allocation3], %s185
          %s187 = sand.u32 %s27, 1
          %s188 = scalar_lea.vmem [#allocation2], %s187
          %s190 = ssub.s32 16, 16
          %191 = vsyncadd %s186, %s190
          %s192 = smul.addr %s17, 16
          %s193 = scalar_lea.hbm %s0, %s192
          %s195 = sshll.u32 %s188, 4
          %s196 = int_to_ptr.vmem [resolvable:$true] %s195
          %198 = dma.hbm_to_vmem [thread:$0]  %s193, 16, %s196, %s186
        $region28: #{tpu_custom_call.1} parent=23 // pred_fallthru
          _
        // Predicated region
        $region29: #{tpu_custom_call.1} parent=23 // pred_check
          %p199 = pneg %p63
        $region30: #{tpu_custom_call.1} parent=23 // pred_check_branch
          %201 = sbr.rel (%p199) target = $region32
        $region31: #{tpu_custom_call.1} parent=23 // pred_region
          %p202 = scmp.lt.s32.totalorder %s17, 1
          %s203 = scalar_select %p202, %s17, 1
          %s204 = scalar_lea.vmem %s1, %s203
        $region32: #{tpu_custom_call.1} parent=23 // pred_fallthru
          _
      $region24: #{tpu_custom_call.1} parent=5 // pred_fallthru
        _
      %p205 = scmp.le.s32.totalorder 1, %s17
      %p206 = scmp.lt.s32.totalorder %s17, 3
      %p207 = pnand %p205, %p206
      %p208 = pneg %p207
      // Predicated region
      $region33: #{tpu_custom_call.1} parent=5 // pred_check
        _
      $region34: #{tpu_custom_call.1} parent=5 // pred_check_branch
        %210 = sbr.rel (%p207) target = $region36
      $region35: #{tpu_custom_call.1} parent=5 // pred_region
        %s211 = ssub.s32 %s17, 1
        %s212 = sand.u32 %s30, 1
        %s213 = scalar_lea.sflag [#allocation3], %s212
        %s214 = sand.u32 %s30, 1
        %s215 = scalar_lea.vmem [#allocation2], %s214
        // Predicated region
        $region37: #{tpu_custom_call.1} parent=35 // pred_check
          %p216 = pneg %p43
        $region38: #{tpu_custom_call.1} parent=35 // pred_check_branch
          %218 = sbr.rel (%p216) target = $region40
        $region39: #{tpu_custom_call.1} parent=35 // pred_region
          %219 = dma.done %s213, 16
        $region40: #{tpu_custom_call.1} parent=35 // pred_fallthru
          _
        // Predicated region
        $region41: #{tpu_custom_call.1} parent=35 // pred_check
          %p220 = pneg %p90
        $region42: #{tpu_custom_call.1} parent=35 // pred_check_branch
          %222 = sbr.rel (%p220) target = $region44
        $region43: #{tpu_custom_call.1} parent=35 // pred_region
          %223 = dma.done [#allocation6], 1024
        $region44: #{tpu_custom_call.1} parent=35 // pred_fallthru
          _
        // Predicated region
        $region45: #{tpu_custom_call.1} parent=35 // pred_check
          %p224 = pneg %p111
        $region46: #{tpu_custom_call.1} parent=35 // pred_check_branch
          %226 = sbr.rel (%p224) target = $region48
        $region47: #{tpu_custom_call.1} parent=35 // pred_region
          %227 = dma.done [#allocation6], 1024
        $region48: #{tpu_custom_call.1} parent=35 // pred_fallthru
          _
        %s228 = sand.u32 %s30, 1
        %s229 = scalar_lea.sflag [#allocation3], %s228
        %s230 = sand.u32 %s30, 1
        %s231 = scalar_lea.vmem [#allocation2], %s230
        %p232 = pneg %p43
        %p233 = pneg %p40
        %p234 = scmp.lt.s32.totalorder %s22, 1
        %s235 = scalar_select %p234, %s22, 1
        %s236 = scalar_lea.vmem %s1, %s235
        %p237 = pneg %p69
        %p238 = pneg %p66
        %p239 = pneg %p90
        %p240 = pneg %p87
        %p241 = pneg %p111
        %p242 = pneg %p108
        %p243 = pneg %p137
        %p244 = pneg %p134
        %s245 = sand.u32 %s124, 1
        %s246 = scalar_lea.sflag [#allocation4], %s245
        %s247 = sand.u32 %s124, 1
        %s248 = scalar_lea.vmem [#allocation8], %s247
        %p249 = scmp.lt.s32.totalorder %s22, 1
        %s250 = scalar_select %p249, %s22, 1
        %s251 = scalar_lea.vmem %s1, %s250
        %v252 = vld [vmem:[%s215] sm:$0x1]
        %v253 = vld [vmem:[%s251] sm:$0x1]
        %v254 = vlaneseq
        %v255 = vshrl.u32 %v254, 7
        %v256 = vadd.s32 %v255, 8
        %v257 = vadd.s32 %v255, 16
        %v258 = vadd.s32 %v255, 24
        %v259 = vadd.s32 %v255, 32
        %v260 = vadd.s32 %v255, 40
        %v261 = vadd.s32 %v255, 48
        %v262 = vadd.s32 %v255, 56
        %v263 = vlaneseq
        %v264 = vshrl.u32 %v263, 7
        %v265 = vsub.s32 0, %v264
        %v266 = vrot.slane %v252, %v265
        %vm267 = vcmp.eq.s32.totalorder %v255, %v266
        %vm268 = vcmp.eq.s32.totalorder %v256, %v266
        %vm269 = vcmp.eq.s32.totalorder %v257, %v266
        %vm270 = vcmp.eq.s32.totalorder %v258, %v266
        %vm271 = vcmp.eq.s32.totalorder %v259, %v266
        %vm272 = vcmp.eq.s32.totalorder %v260, %v266
        %vm273 = vcmp.eq.s32.totalorder %v261, %v266
        %vm274 = vcmp.eq.s32.totalorder %v262, %v266
        %v275 = vsel %vm267, 1, 0
        %v276 = vsel %vm268, 1, 0
        %v277 = vsel %vm269, 1, 0
        %v278 = vsel %vm270, 1, 0
        %v279 = vsel %vm271, 1, 0
        %v280 = vsel %vm272, 1, 0
        %v281 = vsel %vm273, 1, 0
        %v282 = vsel %vm274, 1, 0
        %v283 = vcvt.s32.f32 %v275
        %v284 = vcvt.s32.f32 %v276
        %v285 = vcvt.s32.f32 %v277
        %v286 = vcvt.s32.f32 %v278
        %v287 = vcvt.s32.f32 %v279
        %v288 = vcvt.s32.f32 %v280
        %v289 = vcvt.s32.f32 %v281
        %v290 = vcvt.s32.f32 %v282
        %v291 = vlaneseq
        %v292 = vshrl.u32 %v291, 7
        %v293 = vsub.s32 0, %v292
        %v294 = vrot.slane %v253, %v293
        %vm295 = vcmp.eq.s32.totalorder %v255, %v294
        %vm296 = vcmp.eq.s32.totalorder %v256, %v294
        %vm297 = vcmp.eq.s32.totalorder %v257, %v294
        %vm298 = vcmp.eq.s32.totalorder %v258, %v294
        %vm299 = vcmp.eq.s32.totalorder %v259, %v294
        %vm300 = vcmp.eq.s32.totalorder %v260, %v294
        %vm301 = vcmp.eq.s32.totalorder %v261, %v294
        %vm302 = vcmp.eq.s32.totalorder %v262, %v294
        %v303 = vsel %vm295, 1, 0
        %v304 = vsel %vm296, 1, 0
        %v305 = vsel %vm297, 1, 0
        %v306 = vsel %vm298, 1, 0
        %v307 = vsel %vm299, 1, 0
        %v308 = vsel %vm300, 1, 0
        %v309 = vsel %vm301, 1, 0
        %v310 = vsel %vm302, 1, 0
        %v311 = vcvt.s32.f32 %v303
        %v312 = vcvt.s32.f32 %v304
        %v313 = vcvt.s32.f32 %v305
        %v314 = vcvt.s32.f32 %v306
        %v315 = vcvt.s32.f32 %v307
        %v316 = vcvt.s32.f32 %v308
        %v317 = vcvt.s32.f32 %v309
        %v318 = vcvt.s32.f32 %v310
        %v319 = vld [vmem:[#allocation5] sm:$0xff]
        %v320 = vld [vmem:[#allocation5 + $0x8] sm:$0xff]
        %v321 = vld [vmem:[#allocation5 + $0x10] sm:$0xff]
        %v322 = vld [vmem:[#allocation5 + $0x18] sm:$0xff]
        %v323 = vld [vmem:[#allocation5 + $0x20] sm:$0xff]
        %v324 = vld [vmem:[#allocation5 + $0x28] sm:$0xff]
        %v325 = vld [vmem:[#allocation5 + $0x30] sm:$0xff]
        %v326 = vld [vmem:[#allocation5 + $0x38] sm:$0xff]
        %327 = vxpose.xlu0.b32.start [1/16] %v319, 128
        %328 = vxpose.xlu0.b32.cont [2/16] %v320, 128
        %329 = vxpose.xlu0.b32.cont [3/16] %v321, 128
        %330 = vxpose.xlu0.b32.cont [4/16] %v322, 128
        %331 = vxpose.xlu0.b32.cont [5/16] %v323, 128
        %332 = vxpose.xlu0.b32.cont [6/16] %v324, 128
        %333 = vxpose.xlu0.b32.cont [7/16] %v325, 128
        %334 = vxpose.xlu0.b32.cont [8/16] %v326, 128
        %335 = vxpose.xlu0.b32.cont [9/16] 0.0, 128
        %336 = vxpose.xlu0.b32.cont [10/16] 0.0, 128
        %337 = vxpose.xlu0.b32.cont [11/16] 0.0, 128
        %338 = vxpose.xlu0.b32.cont [12/16] 0.0, 128
        %339 = vxpose.xlu0.b32.cont [13/16] 0.0, 128
        %340 = vxpose.xlu0.b32.cont [14/16] 0.0, 128
        %341 = vxpose.xlu0.b32.cont [15/16] 0.0, 128
        %342 = vxpose.xlu0.b32.end [16/16] 0.0, 128
        %v343 = vpop.trf.xlu0
        %v344 = vpop.trf.xlu0
        %v345 = vpop.trf.xlu0
        %v346 = vpop.trf.xlu0
        %v347 = vpop.trf.xlu0
        %v348 = vpop.trf.xlu0
        %v349 = vpop.trf.xlu0
        %v350 = vpop.trf.xlu0
        %v351 = vpop.trf.xlu0
        %v352 = vpop.trf.xlu0
        %v353 = vpop.trf.xlu0
        %v354 = vpop.trf.xlu0
        %v355 = vpop.trf.xlu0
        %v356 = vpop.trf.xlu0
        %v357 = vpop.trf.xlu0
        %v358 = vpop.trf.xlu0
        %vm359 = vcmask 523264
        %v361 = vsel %vm359, %v343, 0
        %v364 = vsel %vm359, %v344, 0
        %v367 = vsel %vm359, %v345, 0
        %v370 = vsel %vm359, %v346, 0
        %v373 = vsel %vm359, %v347, 0
        %v376 = vsel %vm359, %v348, 0
        %v379 = vsel %vm359, %v349, 0
        %v382 = vsel %vm359, %v350, 0
        %v385 = vsel %vm359, %v351, 0
        %v388 = vsel %vm359, %v352, 0
        %v391 = vsel %vm359, %v353, 0
        %v394 = vsel %vm359, %v354, 0
        %v397 = vsel %vm359, %v355, 0
        %v400 = vsel %vm359, %v356, 0
        %v403 = vsel %vm359, %v357, 0
        %v406 = vsel %vm359, %v358, 0
        %408 = vmatprep.subr.mxu0 0.0
        %v409 = vand.u32 %v283, 4294901760
        %410 = vmatpush1.msra.mxu0 %v409
        %411 = vmatprep.subr.mxu0 0.0
        %v412 = vand.u32 %v284, 4294901760
        %413 = vmatpush1.msra.mxu0 %v412
        %414 = vmatprep.subr.mxu0 0.0
        %v415 = vand.u32 %v285, 4294901760
        %416 = vmatpush1.msra.mxu0 %v415
        %417 = vmatprep.subr.mxu0 0.0
        %v418 = vand.u32 %v286, 4294901760
        %419 = vmatpush1.msra.mxu0 %v418
        %420 = vmatprep.subr.mxu0 0.0
        %v421 = vand.u32 %v287, 4294901760
        %422 = vmatpush1.msra.mxu0 %v421
        %423 = vmatprep.subr.mxu0 0.0
        %v424 = vand.u32 %v288, 4294901760
        %425 = vmatpush1.msra.mxu0 %v424
        %426 = vmatprep.subr.mxu0 0.0
        %v427 = vand.u32 %v289, 4294901760
        %428 = vmatpush1.msra.mxu0 %v427
        %429 = vmatprep.subr.mxu0 0.0
        %v430 = vand.u32 %v290, 4294901760
        %431 = vmatpush1.msra.mxu0 %v430
        %432 = vmatprep.subr.mxu0 0.0
        %433 = vmatpush1.msra.mxu0 0.0
        %434 = vmatprep.subr.mxu0 0.0
        %435 = vmatpush1.msra.mxu0 0.0
        %436 = vmatprep.subr.mxu0 0.0
        %437 = vmatpush1.msra.mxu0 0.0
        %438 = vmatprep.subr.mxu0 0.0
        %439 = vmatpush1.msra.mxu0 0.0
        %440 = vmatprep.subr.mxu0 0.0
        %441 = vmatpush1.msra.mxu0 0.0
        %442 = vmatprep.subr.mxu0 0.0
        %443 = vmatpush1.msra.mxu0 0.0
        %444 = vmatprep.subr.mxu0 0.0
        %445 = vmatpush1.msra.mxu0 0.0
        %446 = vmatprep.subr.mxu0 0.0
        %447 = vmatpush1.msra.mxu0 0.0
        %448 = vmatprep.subr.mxu0 0.0
        %449 = vmatpush1.msra.mxu0 0.0
        %450 = vmatprep.subr.mxu0 0.0
        %451 = vmatpush1.msra.mxu0 0.0
        %452 = vmatprep.subr.mxu0 0.0
        %453 = vmatpush1.msra.mxu0 0.0
        %454 = vmatprep.subr.mxu0 0.0
        %455 = vmatpush1.msra.mxu0 0.0
        %456 = vmatprep.subr.mxu0 0.0
        %457 = vmatpush1.msra.mxu0 0.0
        %458 = vmatprep.subr.mxu0 0.0
        %459 = vmatpush1.msra.mxu0 0.0
        %460 = vmatprep.subr.mxu0 0.0
        %461 = vmatpush1.msra.mxu0 0.0
        %462 = vmatprep.subr.mxu0 0.0
        %463 = vmatpush1.msra.mxu0 0.0
        %464 = vmatprep.subr.mxu0 0.0
        %465 = vmatpush1.msra.mxu0 0.0
        %466 = vmatprep.subr.mxu0 0.0
        %467 = vmatpush1.msra.mxu0 0.0
        %468 = vmatprep.subr.mxu0 0.0
        %469 = vmatpush1.msra.mxu0 0.0
        %470 = vmatprep.subr.mxu0 0.0
        %471 = vmatpush1.msra.mxu0 0.0
        %472 = vmatprep.subr.mxu0 0.0
        %473 = vmatpush1.msra.mxu0 0.0
        %474 = vmatprep.subr.mxu0 0.0
        %475 = vmatpush1.msra.mxu0 0.0
        %476 = vmatprep.subr.mxu0 0.0
        %477 = vmatpush1.msra.mxu0 0.0
        %478 = vmatprep.subr.mxu0 0.0
        %479 = vmatpush1.msra.mxu0 0.0
        %480 = vmatprep.mubr.f32.mxu0 0.0
        %v481 = vand.u32 %v361, 4294901760
        %v482 = vsub.f32 %v361, %v481
        %v483 = vand.u32 %v482, 4294901760
        %v484 = vsub.f32 %v482, %v483
        %v485 = vand.u32 %v484, 4294901760
        %486 = vmatmul.mubr.f32.gmra.mrb[0].mxu0 %v485
        %v487 = vpop.f32.mrb[0].mxu0
        %v488 = vadd.f32 0.0, %v487
        %v489 = vpop.f32.mrb[0].mxu0
        %490 = vmatprep.mubr.f32.mxu0 0.0
        %v491 = vand.u32 %v364, 4294901760
        %v492 = vsub.f32 %v364, %v491
        %v493 = vand.u32 %v492, 4294901760
        %v494 = vsub.f32 %v492, %v493
        %v495 = vand.u32 %v494, 4294901760
        %496 = vmatmul.mubr.f32.gmra.mrb[0].mxu0 %v495
        %v497 = vpop.f32.mrb[0].mxu0
        %v498 = vadd.f32 0.0, %v497
        %v499 = vpop.f32.mrb[0].mxu0
        %500 = vmatprep.mubr.f32.mxu0 0.0
        %v501 = vand.u32 %v367, 4294901760
        %v502 = vsub.f32 %v367, %v501
        %v503 = vand.u32 %v502, 4294901760
        %v504 = vsub.f32 %v502, %v503
        %v505 = vand.u32 %v504, 4294901760
        %506 = vmatmul.mubr.f32.gmra.mrb[0].mxu0 %v505
        %v507 = vpop.f32.mrb[0].mxu0
        %v508 = vadd.f32 0.0, %v507
        %v509 = vpop.f32.mrb[0].mxu0
        %510 = vmatprep.mubr.f32.mxu0 0.0
        %v511 = vand.u32 %v370, 4294901760
        %v512 = vsub.f32 %v370, %v511
        %v513 = vand.u32 %v512, 4294901760
        %v514 = vsub.f32 %v512, %v513
        %v515 = vand.u32 %v514, 4294901760
        %516 = vmatmul.mubr.f32.gmra.mrb[0].mxu0 %v515
        %v517 = vpop.f32.mrb[0].mxu0
        %v518 = vadd.f32 0.0, %v517
        %v519 = vpop.f32.mrb[0].mxu0
        %520 = vmatprep.mubr.f32.mxu0 0.0
        %v521 = vand.u32 %v373, 4294901760
        %v522 = vsub.f32 %v373, %v521
        %v523 = vand.u32 %v522, 4294901760
        %v524 = vsub.f32 %v522, %v523
        %v525 = vand.u32 %v524, 4294901760
        %526 = vmatmul.mubr.f32.gmra.mrb[0].mxu0 %v525
        %v527 = vpop.f32.mrb[0].mxu0
        %v528 = vadd.f32 0.0, %v527
        %v529 = vpop.f32.mrb[0].mxu0
        %530 = vmatprep.mubr.f32.mxu0 0.0
        %v531 = vand.u32 %v376, 4294901760
        %v532 = vsub.f32 %v376, %v531
        %v533 = vand.u32 %v532, 4294901760
        %v534 = vsub.f32 %v532, %v533
        %v535 = vand.u32 %v534, 4294901760
        %536 = vmatmul.mubr.f32.gmra.mrb[0].mxu0 %v535
        %v537 = vpop.f32.mrb[0].mxu0
        %v538 = vadd.f32 0.0, %v537
        %v539 = vpop.f32.mrb[0].mxu0
        %540 = vmatprep.mubr.f32.mxu0 0.0
        %v541 = vand.u32 %v379, 4294901760
        %v542 = vsub.f32 %v379, %v541
        %v543 = vand.u32 %v542, 4294901760
        %v544 = vsub.f32 %v542, %v543
        %v545 = vand.u32 %v544, 4294901760
        %546 = vmatmul.mubr.f32.gmra.mrb[0].mxu0 %v545
        %v547 = vpop.f32.mrb[0].mxu0
        %v548 = vadd.f32 0.0, %v547
        %v549 = vpop.f32.mrb[0].mxu0
        %550 = vmatprep.mubr.f32.mxu0 0.0
        %v551 = vand.u32 %v382, 4294901760
        %v552 = vsub.f32 %v382, %v551
        %v553 = vand.u32 %v552, 4294901760
        %v554 = vsub.f32 %v552, %v553
        %v555 = vand.u32 %v554, 4294901760
        %556 = vmatmul.mubr.f32.gmra.mrb[0].mxu0 %v555
        %v557 = vpop.f32.mrb[0].mxu0
        %v558 = vadd.f32 0.0, %v557
        %v559 = vpop.f32.mrb[0].mxu0
        %560 = vmatprep.mubr.f32.mxu0 0.0
        %v561 = vand.u32 %v385, 4294901760
        %v562 = vsub.f32 %v385, %v561
        %v563 = vand.u32 %v562, 4294901760
        %v564 = vsub.f32 %v562, %v563
        %v565 = vand.u32 %v564, 4294901760
        %566 = vmatmul.mubr.f32.gmra.mrb[0].mxu0 %v565
        %v567 = vpop.f32.mrb[0].mxu0
        %v568 = vadd.f32 0.0, %v567
        %v569 = vpop.f32.mrb[0].mxu0
        %570 = vmatprep.mubr.f32.mxu0 0.0
        %v571 = vand.u32 %v388, 4294901760
        %v572 = vsub.f32 %v388, %v571
        %v573 = vand.u32 %v572, 4294901760
        %v574 = vsub.f32 %v572, %v573
        %v575 = vand.u32 %v574, 4294901760
        %576 = vmatmul.mubr.f32.gmra.mrb[0].mxu0 %v575
        %v577 = vpop.f32.mrb[0].mxu0
        %v578 = vadd.f32 0.0, %v577
        %v579 = vpop.f32.mrb[0].mxu0
        %580 = vmatprep.mubr.f32.mxu0 0.0
        %v581 = vand.u32 %v391, 4294901760
        %v582 = vsub.f32 %v391, %v581
        %v583 = vand.u32 %v582, 4294901760
        %v584 = vsub.f32 %v582, %v583
        %v585 = vand.u32 %v584, 4294901760
        %586 = vmatmul.mubr.f32.gmra.mrb[0].mxu0 %v585
        %v587 = vpop.f32.mrb[0].mxu0
        %v588 = vadd.f32 0.0, %v587
        %v589 = vpop.f32.mrb[0].mxu0
        %590 = vmatprep.mubr.f32.mxu0 0.0
        %v591 = vand.u32 %v394, 4294901760
        %v592 = vsub.f32 %v394, %v591
        %v593 = vand.u32 %v592, 4294901760
        %v594 = vsub.f32 %v592, %v593
        %v595 = vand.u32 %v594, 4294901760
        %596 = vmatmul.mubr.f32.gmra.mrb[0].mxu0 %v595
        %v597 = vpop.f32.mrb[0].mxu0
        %v598 = vadd.f32 0.0, %v597
        %v599 = vpop.f32.mrb[0].mxu0
        %600 = vmatprep.mubr.f32.mxu0 0.0
        %v601 = vand.u32 %v397, 4294901760
        %v602 = vsub.f32 %v397, %v601
        %v603 = vand.u32 %v602, 4294901760
        %v604 = vsub.f32 %v602, %v603
        %v605 = vand.u32 %v604, 4294901760
        %606 = vmatmul.mubr.f32.gmra.mrb[0].mxu0 %v605
        %v607 = vpop.f32.mrb[0].mxu0
        %v608 = vadd.f32 0.0, %v607
        %v609 = vpop.f32.mrb[0].mxu0
        %610 = vmatprep.mubr.f32.mxu0 0.0
        %v611 = vand.u32 %v400, 4294901760
        %v612 = vsub.f32 %v400, %v611
        %v613 = vand.u32 %v612, 4294901760
        %v614 = vsub.f32 %v612, %v613
        %v615 = vand.u32 %v614, 4294901760
        %616 = vmatmul.mubr.f32.gmra.mrb[0].mxu0 %v615
        %v617 = vpop.f32.mrb[0].mxu0
        %v618 = vadd.f32 0.0, %v617
        %v619 = vpop.f32.mrb[0].mxu0
        %620 = vmatprep.mubr.f32.mxu0 0.0
        %v621 = vand.u32 %v403, 4294901760
        %v622 = vsub.f32 %v403, %v621
        %v623 = vand.u32 %v622, 4294901760
        %v624 = vsub.f32 %v622, %v623
        %v625 = vand.u32 %v624, 4294901760
        %626 = vmatmul.mubr.f32.gmra.mrb[0].mxu0 %v625
        %v627 = vpop.f32.mrb[0].mxu0
        %v628 = vadd.f32 0.0, %v627
        %v629 = vpop.f32.mrb[0].mxu0
        %630 = vmatprep.mubr.f32.mxu0 0.0
        %v631 = vand.u32 %v406, 4294901760
        %v632 = vsub.f32 %v406, %v631
        %v633 = vand.u32 %v632, 4294901760
        %v634 = vsub.f32 %v632, %v633
        %v635 = vand.u32 %v634, 4294901760
        %636 = vmatmul.mubr.f32.gmra.mrb[0].mxu0 %v635
        %v637 = vpop.f32.mrb[0].mxu0
        %v638 = vadd.f32 0.0, %v637
        %v639 = vpop.f32.mrb[0].mxu0
        %640 = vdwg.mxu0
        %641 = vmatprep.subr.mxu0 0.0
        %v642 = vand.u32 %v283, 4294901760
        %v643 = vsub.f32 %v283, %v642
        %v644 = vand.u32 %v643, 4294901760
        %v645 = vsub.f32 %v643, %v644
        %v646 = vand.u32 %v645, 4294901760
        %647 = vmatpush1.msra.mxu0 %v646
        %648 = vmatprep.subr.mxu0 0.0
        %v649 = vand.u32 %v284, 4294901760
        %v650 = vsub.f32 %v284, %v649
        %v651 = vand.u32 %v650, 4294901760
        %v652 = vsub.f32 %v650, %v651
        %v653 = vand.u32 %v652, 4294901760
        %654 = vmatpush1.msra.mxu0 %v653
        %655 = vmatprep.subr.mxu0 0.0
        %v656 = vand.u32 %v285, 4294901760
        %v657 = vsub.f32 %v285, %v656
        %v658 = vand.u32 %v657, 4294901760
        %v659 = vsub.f32 %v657, %v658
        %v660 = vand.u32 %v659, 4294901760
        %661 = vmatpush1.msra.mxu0 %v660
        %662 = vmatprep.subr.mxu0 0.0
        %v663 = vand.u32 %v286, 4294901760
        %v664 = vsub.f32 %v286, %v663
        %v665 = vand.u32 %v664, 4294901760
        %v666 = vsub.f32 %v664, %v665
        %v667 = vand.u32 %v666, 4294901760
        %668 = vmatpush1.msra.mxu0 %v667
        %669 = vmatprep.subr.mxu0 0.0
        %v670 = vand.u32 %v287, 4294901760
        %v671 = vsub.f32 %v287, %v670
        %v672 = vand.u32 %v671, 4294901760
        %v673 = vsub.f32 %v671, %v672
        %v674 = vand.u32 %v673, 4294901760
        %675 = vmatpush1.msra.mxu0 %v674
        %676 = vmatprep.subr.mxu0 0.0
        %v677 = vand.u32 %v288, 4294901760
        %v678 = vsub.f32 %v288, %v677
        %v679 = vand.u32 %v678, 4294901760
        %v680 = vsub.f32 %v678, %v679
        %v681 = vand.u32 %v680, 4294901760
        %682 = vmatpush1.msra.mxu0 %v681
        %683 = vmatprep.subr.mxu0 0.0
        %v684 = vand.u32 %v289, 4294901760
        %v685 = vsub.f32 %v289, %v684
        %v686 = vand.u32 %v685, 4294901760
        %v687 = vsub.f32 %v685, %v686
        %v688 = vand.u32 %v687, 4294901760
        %689 = vmatpush1.msra.mxu0 %v688
        %690 = vmatprep.subr.mxu0 0.0
        %v691 = vand.u32 %v290, 4294901760
        %v692 = vsub.f32 %v290, %v691
        %v693 = vand.u32 %v692, 4294901760
        %v694 = vsub.f32 %v692, %v693
        %v695 = vand.u32 %v694, 4294901760
        %696 = vmatpush1.msra.mxu0 %v695
        %697 = vmatprep.subr.mxu0 0.0
        %698 = vmatpush1.msra.mxu0 0.0
        %699 = vmatprep.subr.mxu0 0.0
        %700 = vmatpush1.msra.mxu0 0.0
        %701 = vmatprep.subr.mxu0 0.0
        %702 = vmatpush1.msra.mxu0 0.0
        %703 = vmatprep.subr.mxu0 0.0
        %704 = vmatpush1.msra.mxu0 0.0
        %705 = vmatprep.subr.mxu0 0.0
        %706 = vmatpush1.msra.mxu0 0.0
        %707 = vmatprep.subr.mxu0 0.0
        %708 = vmatpush1.msra.mxu0 0.0
        %709 = vmatprep.subr.mxu0 0.0
        %710 = vmatpush1.msra.mxu0 0.0
        %711 = vmatprep.subr.mxu0 0.0
        %712 = vmatpush1.msra.mxu0 0.0
        %713 = vmatprep.subr.mxu0 0.0
        %714 = vmatpush1.msra.mxu0 0.0
        %715 = vmatprep.subr.mxu0 0.0
        %716 = vmatpush1.msra.mxu0 0.0
        %717 = vmatprep.subr.mxu0 0.0
        %718 = vmatpush1.msra.mxu0 0.0
        %719 = vmatprep.subr.mxu0 0.0
        %720 = vmatpush1.msra.mxu0 0.0
        %721 = vmatprep.subr.mxu0 0.0
        %722 = vmatpush1.msra.mxu0 0.0
        %723 = vmatprep.subr.mxu0 0.0
        %724 = vmatpush1.msra.mxu0 0.0
        %725 = vmatprep.subr.mxu0 0.0
        %726 = vmatpush1.msra.mxu0 0.0
        %727 = vmatprep.subr.mxu0 0.0
        %728 = vmatpush1.msra.mxu0 0.0
        %729 = vmatprep.subr.mxu0 0.0
        %730 = vmatpush1.msra.mxu0 0.0
        %731 = vmatprep.subr.mxu0 0.0
        %732 = vmatpush1.msra.mxu0 0.0
        %733 = vmatprep.subr.mxu0 0.0
        %734 = vmatpush1.msra.mxu0 0.0
        %735 = vmatprep.subr.mxu0 0.0
        %736 = vmatpush1.msra.mxu0 0.0
        %737 = vmatprep.subr.mxu0 0.0
        %738 = vmatpush1.msra.mxu0 0.0
        %739 = vmatprep.subr.mxu0 0.0
        %740 = vmatpush1.msra.mxu0 0.0
        %741 = vmatprep.subr.mxu0 0.0
        %742 = vmatpush1.msra.mxu0 0.0
        %743 = vmatprep.subr.mxu0 0.0
        %744 = vmatpush1.msra.mxu0 0.0
        %745 = vmatprep.mubr.f32.mxu0 0.0
        %v746 = vand.u32 %v361, 4294901760
        %747 = vmatmul.mubr.f32.gmra.mrb[0].mxu0 %v746
        %v748 = vpop.f32.mrb[0].mxu0
        %v749 = vadd.f32 %v488, %v748
        %v750 = vpop.f32.mrb[0].mxu0
        %751 = vmatprep.mubr.f32.mxu0 0.0
        %v752 = vand.u32 %v364, 4294901760
        %753 = vmatmul.mubr.f32.gmra.mrb[0].mxu0 %v752
        %v754 = vpop.f32.mrb[0].mxu0
        %v755 = vadd.f32 %v498, %v754
        %v756 = vpop.f32.mrb[0].mxu0
        %757 = vmatprep.mubr.f32.mxu0 0.0
        %v758 = vand.u32 %v367, 4294901760
        %759 = vmatmul.mubr.f32.gmra.mrb[0].mxu0 %v758
        %v760 = vpop.f32.mrb[0].mxu0
        %v761 = vadd.f32 %v508, %v760
        %v762 = vpop.f32.mrb[0].mxu0
        %763 = vmatprep.mubr.f32.mxu0 0.0
        %v764 = vand.u32 %v370, 4294901760
        %765 = vmatmul.mubr.f32.gmra.mrb[0].mxu0 %v764
        %v766 = vpop.f32.mrb[0].mxu0
        %v767 = vadd.f32 %v518, %v766
        %v768 = vpop.f32.mrb[0].mxu0
        %769 = vmatprep.mubr.f32.mxu0 0.0
        %v770 = vand.u32 %v373, 4294901760
        %771 = vmatmul.mubr.f32.gmra.mrb[0].mxu0 %v770
        %v772 = vpop.f32.mrb[0].mxu0
        %v773 = vadd.f32 %v528, %v772
        %v774 = vpop.f32.mrb[0].mxu0
        %775 = vmatprep.mubr.f32.mxu0 0.0
        %v776 = vand.u32 %v376, 4294901760
        %777 = vmatmul.mubr.f32.gmra.mrb[0].mxu0 %v776
        %v778 = vpop.f32.mrb[0].mxu0
        %v779 = vadd.f32 %v538, %v778
        %v780 = vpop.f32.mrb[0].mxu0
        %781 = vmatprep.mubr.f32.mxu0 0.0
        %v782 = vand.u32 %v379, 4294901760
        %783 = vmatmul.mubr.f32.gmra.mrb[0].mxu0 %v782
        %v784 = vpop.f32.mrb[0].mxu0
        %v785 = vadd.f32 %v548, %v784
        %v786 = vpop.f32.mrb[0].mxu0
        %787 = vmatprep.mubr.f32.mxu0 0.0
        %v788 = vand.u32 %v382, 4294901760
        %789 = vmatmul.mubr.f32.gmra.mrb[0].mxu0 %v788
        %v790 = vpop.f32.mrb[0].mxu0
        %v791 = vadd.f32 %v558, %v790
        %v792 = vpop.f32.mrb[0].mxu0
        %793 = vmatprep.mubr.f32.mxu0 0.0
        %v794 = vand.u32 %v385, 4294901760
        %795 = vmatmul.mubr.f32.gmra.mrb[0].mxu0 %v794
        %v796 = vpop.f32.mrb[0].mxu0
        %v797 = vadd.f32 %v568, %v796
        %v798 = vpop.f32.mrb[0].mxu0
        %799 = vmatprep.mubr.f32.mxu0 0.0
        %v800 = vand.u32 %v388, 4294901760
        %801 = vmatmul.mubr.f32.gmra.mrb[0].mxu0 %v800
        %v802 = vpop.f32.mrb[0].mxu0
        %v803 = vadd.f32 %v578, %v802
        %v804 = vpop.f32.mrb[0].mxu0
        %805 = vmatprep.mubr.f32.mxu0 0.0
        %v806 = vand.u32 %v391, 4294901760
        %807 = vmatmul.mubr.f32.gmra.mrb[0].mxu0 %v806
        %v808 = vpop.f32.mrb[0].mxu0
        %v809 = vadd.f32 %v588, %v808
        %v810 = vpop.f32.mrb[0].mxu0
        %811 = vmatprep.mubr.f32.mxu0 0.0
        %v812 = vand.u32 %v394, 4294901760
        %813 = vmatmul.mubr.f32.gmra.mrb[0].mxu0 %v812
        %v814 = vpop.f32.mrb[0].mxu0
        %v815 = vadd.f32 %v598, %v814
        %v816 = vpop.f32.mrb[0].mxu0
        %817 = vmatprep.mubr.f32.mxu0 0.0
        %v818 = vand.u32 %v397, 4294901760
        %819 = vmatmul.mubr.f32.gmra.mrb[0].mxu0 %v818
        %v820 = vpop.f32.mrb[0].mxu0
        %v821 = vadd.f32 %v608, %v820
        %v822 = vpop.f32.mrb[0].mxu0
        %823 = vmatprep.mubr.f32.mxu0 0.0
        %v824 = vand.u32 %v400, 4294901760
        %825 = vmatmul.mubr.f32.gmra.mrb[0].mxu0 %v824
        %v826 = vpop.f32.mrb[0].mxu0
        %v827 = vadd.f32 %v618, %v826
        %v828 = vpop.f32.mrb[0].mxu0
        %829 = vmatprep.mubr.f32.mxu0 0.0
        %v830 = vand.u32 %v403, 4294901760
        %831 = vmatmul.mubr.f32.gmra.mrb[0].mxu0 %v830
        %v832 = vpop.f32.mrb[0].mxu0
        %v833 = vadd.f32 %v628, %v832
        %v834 = vpop.f32.mrb[0].mxu0
        %835 = vmatprep.mubr.f32.mxu0 0.0
        %v836 = vand.u32 %v406, 4294901760
        %837 = vmatmul.mubr.f32.gmra.mrb[0].mxu0 %v836
        %v838 = vpop.f32.mrb[0].mxu0
        %v839 = vadd.f32 %v638, %v838
        %v840 = vpop.f32.mrb[0].mxu0
        %841 = vdwg.mxu0
        %842 = vmatprep.subr.mxu0 0.0
        %v843 = vand.u32 %v283, 4294901760
        %v844 = vsub.f32 %v283, %v843
        %845 = vmatpush1.msra.mxu0 %v844
        %846 = vmatprep.subr.mxu0 0.0
        %v847 = vand.u32 %v284, 4294901760
        %v848 = vsub.f32 %v284, %v847
        %849 = vmatpush1.msra.mxu0 %v848
        %850 = vmatprep.subr.mxu0 0.0
        %v851 = vand.u32 %v285, 4294901760
        %v852 = vsub.f32 %v285, %v851
        %853 = vmatpush1.msra.mxu0 %v852
        %854 = vmatprep.subr.mxu0 0.0
        %v855 = vand.u32 %v286, 4294901760
        %v856 = vsub.f32 %v286, %v855
        %857 = vmatpush1.msra.mxu0 %v856
        %858 = vmatprep.subr.mxu0 0.0
        %v859 = vand.u32 %v287, 4294901760
        %v860 = vsub.f32 %v287, %v859
        %861 = vmatpush1.msra.mxu0 %v860
        %862 = vmatprep.subr.mxu0 0.0
        %v863 = vand.u32 %v288, 4294901760
        %v864 = vsub.f32 %v288, %v863
        %865 = vmatpush1.msra.mxu0 %v864
        %866 = vmatprep.subr.mxu0 0.0
        %v867 = vand.u32 %v289, 4294901760
        %v868 = vsub.f32 %v289, %v867
        %869 = vmatpush1.msra.mxu0 %v868
        %870 = vmatprep.subr.mxu0 0.0
        %v871 = vand.u32 %v290, 4294901760
        %v872 = vsub.f32 %v290, %v871
        %873 = vmatpush1.msra.mxu0 %v872
        %874 = vmatprep.subr.mxu0 0.0
        %875 = vmatpush1.msra.mxu0 0.0
        %876 = vmatprep.subr.mxu0 0.0
        %877 = vmatpush1.msra.mxu0 0.0
        %878 = vmatprep.subr.mxu0 0.0
        %879 = vmatpush1.msra.mxu0 0.0
        %880 = vmatprep.subr.mxu0 0.0
        %881 = vmatpush1.msra.mxu0 0.0
        %882 = vmatprep.subr.mxu0 0.0
        %883 = vmatpush1.msra.mxu0 0.0
        %884 = vmatprep.subr.mxu0 0.0
        %885 = vmatpush1.msra.mxu0 0.0
        %886 = vmatprep.subr.mxu0 0.0
        %887 = vmatpush1.msra.mxu0 0.0
        %888 = vmatprep.subr.mxu0 0.0
        %889 = vmatpush1.msra.mxu0 0.0
        %890 = vmatprep.subr.mxu0 0.0
        %891 = vmatpush1.msra.mxu0 0.0
        %892 = vmatprep.subr.mxu0 0.0
        %893 = vmatpush1.msra.mxu0 0.0
        %894 = vmatprep.subr.mxu0 0.0
        %895 = vmatpush1.msra.mxu0 0.0
        %896 = vmatprep.subr.mxu0 0.0
        %897 = vmatpush1.msra.mxu0 0.0
        %898 = vmatprep.subr.mxu0 0.0
        %899 = vmatpush1.msra.mxu0 0.0
        %900 = vmatprep.subr.mxu0 0.0
        %901 = vmatpush1.msra.mxu0 0.0
        %902 = vmatprep.subr.mxu0 0.0
        %903 = vmatpush1.msra.mxu0 0.0
        %904 = vmatprep.subr.mxu0 0.0
        %905 = vmatpush1.msra.mxu0 0.0
        %906 = vmatprep.subr.mxu0 0.0
        %907 = vmatpush1.msra.mxu0 0.0
        %908 = vmatprep.subr.mxu0 0.0
        %909 = vmatpush1.msra.mxu0 0.0
        %910 = vmatprep.subr.mxu0 0.0
        %911 = vmatpush1.msra.mxu0 0.0
        %912 = vmatprep.subr.mxu0 0.0
        %913 = vmatpush1.msra.mxu0 0.0
        %914 = vmatprep.subr.mxu0 0.0
        %915 = vmatpush1.msra.mxu0 0.0
        %916 = vmatprep.subr.mxu0 0.0
        %917 = vmatpush1.msra.mxu0 0.0
        %918 = vmatprep.subr.mxu0 0.0
        %919 = vmatpush1.msra.mxu0 0.0
        %920 = vmatprep.subr.mxu0 0.0
        %921 = vmatpush1.msra.mxu0 0.0
        %922 = vmatprep.mubr.f32.mxu0 0.0
        %v923 = vand.u32 %v361, 4294901760
        %v924 = vsub.f32 %v361, %v923
        %925 = vmatmul.mubr.f32.gmra.mrb[0].mxu0 %v924
        %v926 = vpop.f32.mrb[0].mxu0
        %v927 = vadd.f32 %v749, %v926
        %v928 = vpop.f32.mrb[0].mxu0
        %929 = vmatprep.mubr.f32.mxu0 0.0
        %v930 = vand.u32 %v364, 4294901760
        %v931 = vsub.f32 %v364, %v930
        %932 = vmatmul.mubr.f32.gmra.mrb[0].mxu0 %v931
        %v933 = vpop.f32.mrb[0].mxu0
        %v934 = vadd.f32 %v755, %v933
        %v935 = vpop.f32.mrb[0].mxu0
        %936 = vmatprep.mubr.f32.mxu0 0.0
        %v937 = vand.u32 %v367, 4294901760
        %v938 = vsub.f32 %v367, %v937
        %939 = vmatmul.mubr.f32.gmra.mrb[0].mxu0 %v938
        %v940 = vpop.f32.mrb[0].mxu0
        %v941 = vadd.f32 %v761, %v940
        %v942 = vpop.f32.mrb[0].mxu0
        %943 = vmatprep.mubr.f32.mxu0 0.0
        %v944 = vand.u32 %v370, 4294901760
        %v945 = vsub.f32 %v370, %v944
        %946 = vmatmul.mubr.f32.gmra.mrb[0].mxu0 %v945
        %v947 = vpop.f32.mrb[0].mxu0
        %v948 = vadd.f32 %v767, %v947
        %v949 = vpop.f32.mrb[0].mxu0
        %950 = vmatprep.mubr.f32.mxu0 0.0
        %v951 = vand.u32 %v373, 4294901760
        %v952 = vsub.f32 %v373, %v951
        %953 = vmatmul.mubr.f32.gmra.mrb[0].mxu0 %v952
        %v954 = vpop.f32.mrb[0].mxu0
        %v955 = vadd.f32 %v773, %v954
        %v956 = vpop.f32.mrb[0].mxu0
        %957 = vmatprep.mubr.f32.mxu0 0.0
        %v958 = vand.u32 %v376, 4294901760
        %v959 = vsub.f32 %v376, %v958
        %960 = vmatmul.mubr.f32.gmra.mrb[0].mxu0 %v959
        %v961 = vpop.f32.mrb[0].mxu0
        %v962 = vadd.f32 %v779, %v961
        %v963 = vpop.f32.mrb[0].mxu0
        %964 = vmatprep.mubr.f32.mxu0 0.0
        %v965 = vand.u32 %v379, 4294901760
        %v966 = vsub.f32 %v379, %v965
        %967 = vmatmul.mubr.f32.gmra.mrb[0].mxu0 %v966
        %v968 = vpop.f32.mrb[0].mxu0
        %v969 = vadd.f32 %v785, %v968
        %v970 = vpop.f32.mrb[0].mxu0
        %971 = vmatprep.mubr.f32.mxu0 0.0
        %v972 = vand.u32 %v382, 4294901760
        %v973 = vsub.f32 %v382, %v972
        %974 = vmatmul.mubr.f32.gmra.mrb[0].mxu0 %v973
        %v975 = vpop.f32.mrb[0].mxu0
        %v976 = vadd.f32 %v791, %v975
        %v977 = vpop.f32.mrb[0].mxu0
        %978 = vmatprep.mubr.f32.mxu0 0.0
        %v979 = vand.u32 %v385, 4294901760
        %v980 = vsub.f32 %v385, %v979
        %981 = vmatmul.mubr.f32.gmra.mrb[0].mxu0 %v980
        %v982 = vpop.f32.mrb[0].mxu0
        %v983 = vadd.f32 %v797, %v982
        %v984 = vpop.f32.mrb[0].mxu0
        %985 = vmatprep.mubr.f32.mxu0 0.0
        %v986 = vand.u32 %v388, 4294901760
        %v987 = vsub.f32 %v388, %v986
        %988 = vmatmul.mubr.f32.gmra.mrb[0].mxu0 %v987
        %v989 = vpop.f32.mrb[0].mxu0
        %v990 = vadd.f32 %v803, %v989
        %v991 = vpop.f32.mrb[0].mxu0
        %992 = vmatprep.mubr.f32.mxu0 0.0
        %v993 = vand.u32 %v391, 4294901760
        %v994 = vsub.f32 %v391, %v993
        %995 = vmatmul.mubr.f32.gmra.mrb[0].mxu0 %v994
        %v996 = vpop.f32.mrb[0].mxu0
        %v997 = vadd.f32 %v809, %v996
        %v998 = vpop.f32.mrb[0].mxu0
        %999 = vmatprep.mubr.f32.mxu0 0.0
        %v1000 = vand.u32 %v394, 4294901760
        %v1001 = vsub.f32 %v394, %v1000
        %1002 = vmatmul.mubr.f32.gmra.mrb[0].mxu0 %v1001
        %v1003 = vpop.f32.mrb[0].mxu0
        %v1004 = vadd.f32 %v815, %v1003
        %v1005 = vpop.f32.mrb[0].mxu0
        %1006 = vmatprep.mubr.f32.mxu0 0.0
        %v1007 = vand.u32 %v397, 4294901760
        %v1008 = vsub.f32 %v397, %v1007
        %1009 = vmatmul.mubr.f32.gmra.mrb[0].mxu0 %v1008
        %v1010 = vpop.f32.mrb[0].mxu0
        %v1011 = vadd.f32 %v821, %v1010
        %v1012 = vpop.f32.mrb[0].mxu0
        %1013 = vmatprep.mubr.f32.mxu0 0.0
        %v1014 = vand.u32 %v400, 4294901760
        %v1015 = vsub.f32 %v400, %v1014
        %1016 = vmatmul.mubr.f32.gmra.mrb[0].mxu0 %v1015
        %v1017 = vpop.f32.mrb[0].mxu0
        %v1018 = vadd.f32 %v827, %v1017
        %v1019 = vpop.f32.mrb[0].mxu0
        %1020 = vmatprep.mubr.f32.mxu0 0.0
        %v1021 = vand.u32 %v403, 4294901760
        %v1022 = vsub.f32 %v403, %v1021
        %1023 = vmatmul.mubr.f32.gmra.mrb[0].mxu0 %v1022
        %v1024 = vpop.f32.mrb[0].mxu0
        %v1025 = vadd.f32 %v833, %v1024
        %v1026 = vpop.f32.mrb[0].mxu0
        %1027 = vmatprep.mubr.f32.mxu0 0.0
        %v1028 = vand.u32 %v406, 4294901760
        %v1029 = vsub.f32 %v406, %v1028
        %1030 = vmatmul.mubr.f32.gmra.mrb[0].mxu0 %v1029
        %v1031 = vpop.f32.mrb[0].mxu0
        %v1032 = vadd.f32 %v839, %v1031
        %v1033 = vpop.f32.mrb[0].mxu0
        %1034 = vdwg.mxu0
        %1035 = vmatprep.subr.mxu0 0.0
        %v1036 = vand.u32 %v283, 4294901760
        %1037 = vmatpush1.msra.mxu0 %v1036
        %1038 = vmatprep.subr.mxu0 0.0
        %v1039 = vand.u32 %v284, 4294901760
        %1040 = vmatpush1.msra.mxu0 %v1039
        %1041 = vmatprep.subr.mxu0 0.0
        %v1042 = vand.u32 %v285, 4294901760
        %1043 = vmatpush1.msra.mxu0 %v1042
        %1044 = vmatprep.subr.mxu0 0.0
        %v1045 = vand.u32 %v286, 4294901760
        %1046 = vmatpush1.msra.mxu0 %v1045
        %1047 = vmatprep.subr.mxu0 0.0
        %v1048 = vand.u32 %v287, 4294901760
        %1049 = vmatpush1.msra.mxu0 %v1048
        %1050 = vmatprep.subr.mxu0 0.0
        %v1051 = vand.u32 %v288, 4294901760
        %1052 = vmatpush1.msra.mxu0 %v1051
        %1053 = vmatprep.subr.mxu0 0.0
        %v1054 = vand.u32 %v289, 4294901760
        %1055 = vmatpush1.msra.mxu0 %v1054
        %1056 = vmatprep.subr.mxu0 0.0
        %v1057 = vand.u32 %v290, 4294901760
        %1058 = vmatpush1.msra.mxu0 %v1057
        %1059 = vmatprep.subr.mxu0 0.0
        %1060 = vmatpush1.msra.mxu0 0.0
        %1061 = vmatprep.subr.mxu0 0.0
        %1062 = vmatpush1.msra.mxu0 0.0
        %1063 = vmatprep.subr.mxu0 0.0
        %1064 = vmatpush1.msra.mxu0 0.0
        %1065 = vmatprep.subr.mxu0 0.0
        %1066 = vmatpush1.msra.mxu0 0.0
        %1067 = vmatprep.subr.mxu0 0.0
        %1068 = vmatpush1.msra.mxu0 0.0
        %1069 = vmatprep.subr.mxu0 0.0
        %1070 = vmatpush1.msra.mxu0 0.0
        %1071 = vmatprep.subr.mxu0 0.0
        %1072 = vmatpush1.msra.mxu0 0.0
        %1073 = vmatprep.subr.mxu0 0.0
        %1074 = vmatpush1.msra.mxu0 0.0
        %1075 = vmatprep.subr.mxu0 0.0
        %1076 = vmatpush1.msra.mxu0 0.0
        %1077 = vmatprep.subr.mxu0 0.0
        %1078 = vmatpush1.msra.mxu0 0.0
        %1079 = vmatprep.subr.mxu0 0.0
        %1080 = vmatpush1.msra.mxu0 0.0
        %1081 = vmatprep.subr.mxu0 0.0
        %1082 = vmatpush1.msra.mxu0 0.0
        %1083 = vmatprep.subr.mxu0 0.0
        %1084 = vmatpush1.msra.mxu0 0.0
        %1085 = vmatprep.subr.mxu0 0.0
        %1086 = vmatpush1.msra.mxu0 0.0
        %1087 = vmatprep.subr.mxu0 0.0
        %1088 = vmatpush1.msra.mxu0 0.0
        %1089 = vmatprep.subr.mxu0 0.0
        %1090 = vmatpush1.msra.mxu0 0.0
        %1091 = vmatprep.subr.mxu0 0.0
        %1092 = vmatpush1.msra.mxu0 0.0
        %1093 = vmatprep.subr.mxu0 0.0
        %1094 = vmatpush1.msra.mxu0 0.0
        %1095 = vmatprep.subr.mxu0 0.0
        %1096 = vmatpush1.msra.mxu0 0.0
        %1097 = vmatprep.subr.mxu0 0.0
        %1098 = vmatpush1.msra.mxu0 0.0
        %1099 = vmatprep.subr.mxu0 0.0
        %1100 = vmatpush1.msra.mxu0 0.0
        %1101 = vmatprep.subr.mxu0 0.0
        %1102 = vmatpush1.msra.mxu0 0.0
        %1103 = vmatprep.subr.mxu0 0.0
        %1104 = vmatpush1.msra.mxu0 0.0
        %1105 = vmatprep.subr.mxu0 0.0
        %1106 = vmatpush1.msra.mxu0 0.0
        %1107 = vmatprep.mubr.f32.mxu0 0.0
        %v1108 = vand.u32 %v361, 4294901760
        %v1109 = vsub.f32 %v361, %v1108
        %v1110 = vand.u32 %v1109, 4294901760
        %1111 = vmatmul.mubr.f32.gmra.mrb[0].mxu0 %v1110
        %v1112 = vpop.f32.mrb[0].mxu0
        %v1113 = vadd.f32 %v927, %v1112
        %v1114 = vpop.f32.mrb[0].mxu0
        %1115 = vmatprep.mubr.f32.mxu0 0.0
        %v1116 = vand.u32 %v364, 4294901760
        %v1117 = vsub.f32 %v364, %v1116
        %v1118 = vand.u32 %v1117, 4294901760
        %1119 = vmatmul.mubr.f32.gmra.mrb[0].mxu0 %v1118
        %v1120 = vpop.f32.mrb[0].mxu0
        %v1121 = vadd.f32 %v934, %v1120
        %v1122 = vpop.f32.mrb[0].mxu0
        %1123 = vmatprep.mubr.f32.mxu0 0.0
        %v1124 = vand.u32 %v367, 4294901760
        %v1125 = vsub.f32 %v367, %v1124
        %v1126 = vand.u32 %v1125, 4294901760
        %1127 = vmatmul.mubr.f32.gmra.mrb[0].mxu0 %v1126
        %v1128 = vpop.f32.mrb[0].mxu0
        %v1129 = vadd.f32 %v941, %v1128
        %v1130 = vpop.f32.mrb[0].mxu0
        %1131 = vmatprep.mubr.f32.mxu0 0.0
        %v1132 = vand.u32 %v370, 4294901760
        %v1133 = vsub.f32 %v370, %v1132
        %v1134 = vand.u32 %v1133, 4294901760
        %1135 = vmatmul.mubr.f32.gmra.mrb[0].mxu0 %v1134
        %v1136 = vpop.f32.mrb[0].mxu0
        %v1137 = vadd.f32 %v948, %v1136
        %v1138 = vpop.f32.mrb[0].mxu0
        %1139 = vmatprep.mubr.f32.mxu0 0.0
        %v1140 = vand.u32 %v373, 4294901760
        %v1141 = vsub.f32 %v373, %v1140
        %v1142 = vand.u32 %v1141, 4294901760
        %1143 = vmatmul.mubr.f32.gmra.mrb[0].mxu0 %v1142
        %v1144 = vpop.f32.mrb[0].mxu0
        %v1145 = vadd.f32 %v955, %v1144
        %v1146 = vpop.f32.mrb[0].mxu0
        %1147 = vmatprep.mubr.f32.mxu0 0.0
        %v1148 = vand.u32 %v376, 4294901760
        %v1149 = vsub.f32 %v376, %v1148
        %v1150 = vand.u32 %v1149, 4294901760
        %1151 = vmatmul.mubr.f32.gmra.mrb[0].mxu0 %v1150
        %v1152 = vpop.f32.mrb[0].mxu0
        %v1153 = vadd.f32 %v962, %v1152
        %v1154 = vpop.f32.mrb[0].mxu0
        %1155 = vmatprep.mubr.f32.mxu0 0.0
        %v1156 = vand.u32 %v379, 4294901760
        %v1157 = vsub.f32 %v379, %v1156
        %v1158 = vand.u32 %v1157, 4294901760
        %1159 = vmatmul.mubr.f32.gmra.mrb[0].mxu0 %v1158
        %v1160 = vpop.f32.mrb[0].mxu0
        %v1161 = vadd.f32 %v969, %v1160
        %v1162 = vpop.f32.mrb[0].mxu0
        %1163 = vmatprep.mubr.f32.mxu0 0.0
        %v1164 = vand.u32 %v382, 4294901760
        %v1165 = vsub.f32 %v382, %v1164
        %v1166 = vand.u32 %v1165, 4294901760
        %1167 = vmatmul.mubr.f32.gmra.mrb[0].mxu0 %v1166
        %v1168 = vpop.f32.mrb[0].mxu0
        %v1169 = vadd.f32 %v976, %v1168
        %v1170 = vpop.f32.mrb[0].mxu0
        %1171 = vmatprep.mubr.f32.mxu0 0.0
        %v1172 = vand.u32 %v385, 4294901760
        %v1173 = vsub.f32 %v385, %v1172
        %v1174 = vand.u32 %v1173, 4294901760
        %1175 = vmatmul.mubr.f32.gmra.mrb[0].mxu0 %v1174
        %v1176 = vpop.f32.mrb[0].mxu0
        %v1177 = vadd.f32 %v983, %v1176
        %v1178 = vpop.f32.mrb[0].mxu0
        %1179 = vmatprep.mubr.f32.mxu0 0.0
        %v1180 = vand.u32 %v388, 4294901760
        %v1181 = vsub.f32 %v388, %v1180
        %v1182 = vand.u32 %v1181, 4294901760
        %1183 = vmatmul.mubr.f32.gmra.mrb[0].mxu0 %v1182
        %v1184 = vpop.f32.mrb[0].mxu0
        %v1185 = vadd.f32 %v990, %v1184
        %v1186 = vpop.f32.mrb[0].mxu0
        %1187 = vmatprep.mubr.f32.mxu0 0.0
        %v1188 = vand.u32 %v391, 4294901760
        %v1189 = vsub.f32 %v391, %v1188
        %v1190 = vand.u32 %v1189, 4294901760
        %1191 = vmatmul.mubr.f32.gmra.mrb[0].mxu0 %v1190
        %v1192 = vpop.f32.mrb[0].mxu0
        %v1193 = vadd.f32 %v997, %v1192
        %v1194 = vpop.f32.mrb[0].mxu0
        %1195 = vmatprep.mubr.f32.mxu0 0.0
        %v1196 = vand.u32 %v394, 4294901760
        %v1197 = vsub.f32 %v394, %v1196
        %v1198 = vand.u32 %v1197, 4294901760
        %1199 = vmatmul.mubr.f32.gmra.mrb[0].mxu0 %v1198
        %v1200 = vpop.f32.mrb[0].mxu0
        %v1201 = vadd.f32 %v1004, %v1200
        %v1202 = vpop.f32.mrb[0].mxu0
        %1203 = vmatprep.mubr.f32.mxu0 0.0
        %v1204 = vand.u32 %v397, 4294901760
        %v1205 = vsub.f32 %v397, %v1204
        %v1206 = vand.u32 %v1205, 4294901760
        %1207 = vmatmul.mubr.f32.gmra.mrb[0].mxu0 %v1206
        %v1208 = vpop.f32.mrb[0].mxu0
        %v1209 = vadd.f32 %v1011, %v1208
        %v1210 = vpop.f32.mrb[0].mxu0
        %1211 = vmatprep.mubr.f32.mxu0 0.0
        %v1212 = vand.u32 %v400, 4294901760
        %v1213 = vsub.f32 %v400, %v1212
        %v1214 = vand.u32 %v1213, 4294901760
        %1215 = vmatmul.mubr.f32.gmra.mrb[0].mxu0 %v1214
        %v1216 = vpop.f32.mrb[0].mxu0
        %v1217 = vadd.f32 %v1018, %v1216
        %v1218 = vpop.f32.mrb[0].mxu0
        %1219 = vmatprep.mubr.f32.mxu0 0.0
        %v1220 = vand.u32 %v403, 4294901760
        %v1221 = vsub.f32 %v403, %v1220
        %v1222 = vand.u32 %v1221, 4294901760
        %1223 = vmatmul.mubr.f32.gmra.mrb[0].mxu0 %v1222
        %v1224 = vpop.f32.mrb[0].mxu0
        %v1225 = vadd.f32 %v1025, %v1224
        %v1226 = vpop.f32.mrb[0].mxu0
        %1227 = vmatprep.mubr.f32.mxu0 0.0
        %v1228 = vand.u32 %v406, 4294901760
        %v1229 = vsub.f32 %v406, %v1228
        %v1230 = vand.u32 %v1229, 4294901760
        %1231 = vmatmul.mubr.f32.gmra.mrb[0].mxu0 %v1230
        %v1232 = vpop.f32.mrb[0].mxu0
        %v1233 = vadd.f32 %v1032, %v1232
        %v1234 = vpop.f32.mrb[0].mxu0
        %1235 = vdwg.mxu0
        %1236 = vmatprep.subr.mxu0 0.0
        %v1237 = vand.u32 %v283, 4294901760
        %v1238 = vsub.f32 %v283, %v1237
        %v1239 = vand.u32 %v1238, 4294901760
        %1240 = vmatpush1.msra.mxu0 %v1239
        %1241 = vmatprep.subr.mxu0 0.0
        %v1242 = vand.u32 %v284, 4294901760
        %v1243 = vsub.f32 %v284, %v1242
        %v1244 = vand.u32 %v1243, 4294901760
        %1245 = vmatpush1.msra.mxu0 %v1244
        %1246 = vmatprep.subr.mxu0 0.0
        %v1247 = vand.u32 %v285, 4294901760
        %v1248 = vsub.f32 %v285, %v1247
        %v1249 = vand.u32 %v1248, 4294901760
        %1250 = vmatpush1.msra.mxu0 %v1249
        %1251 = vmatprep.subr.mxu0 0.0
        %v1252 = vand.u32 %v286, 4294901760
        %v1253 = vsub.f32 %v286, %v1252
        %v1254 = vand.u32 %v1253, 4294901760
        %1255 = vmatpush1.msra.mxu0 %v1254
        %1256 = vmatprep.subr.mxu0 0.0
        %v1257 = vand.u32 %v287, 4294901760
        %v1258 = vsub.f32 %v287, %v1257
        %v1259 = vand.u32 %v1258, 4294901760
        %1260 = vmatpush1.msra.mxu0 %v1259
        %1261 = vmatprep.subr.mxu0 0.0
        %v1262 = vand.u32 %v288, 4294901760
        %v1263 = vsub.f32 %v288, %v1262
        %v1264 = vand.u32 %v1263, 4294901760
        %1265 = vmatpush1.msra.mxu0 %v1264
        %1266 = vmatprep.subr.mxu0 0.0
        %v1267 = vand.u32 %v289, 4294901760
        %v1268 = vsub.f32 %v289, %v1267
        %v1269 = vand.u32 %v1268, 4294901760
        %1270 = vmatpush1.msra.mxu0 %v1269
        %1271 = vmatprep.subr.mxu0 0.0
        %v1272 = vand.u32 %v290, 4294901760
        %v1273 = vsub.f32 %v290, %v1272
        %v1274 = vand.u32 %v1273, 4294901760
        %1275 = vmatpush1.msra.mxu0 %v1274
        %1276 = vmatprep.subr.mxu0 0.0
        %1277 = vmatpush1.msra.mxu0 0.0
        %1278 = vmatprep.subr.mxu0 0.0
        %1279 = vmatpush1.msra.mxu0 0.0
        %1280 = vmatprep.subr.mxu0 0.0
        %1281 = vmatpush1.msra.mxu0 0.0
        %1282 = vmatprep.subr.mxu0 0.0
        %1283 = vmatpush1.msra.mxu0 0.0
        %1284 = vmatprep.subr.mxu0 0.0
        %1285 = vmatpush1.msra.mxu0 0.0
        %1286 = vmatprep.subr.mxu0 0.0
        %1287 = vmatpush1.msra.mxu0 0.0
        %1288 = vmatprep.subr.mxu0 0.0
        %1289 = vmatpush1.msra.mxu0 0.0
        %1290 = vmatprep.subr.mxu0 0.0
        %1291 = vmatpush1.msra.mxu0 0.0
        %1292 = vmatprep.subr.mxu0 0.0
        %1293 = vmatpush1.msra.mxu0 0.0
        %1294 = vmatprep.subr.mxu0 0.0
        %1295 = vmatpush1.msra.mxu0 0.0
        %1296 = vmatprep.subr.mxu0 0.0
        %1297 = vmatpush1.msra.mxu0 0.0
        %1298 = vmatprep.subr.mxu0 0.0
        %1299 = vmatpush1.msra.mxu0 0.0
        %1300 = vmatprep.subr.mxu0 0.0
        %1301 = vmatpush1.msra.mxu0 0.0
        %1302 = vmatprep.subr.mxu0 0.0
        %1303 = vmatpush1.msra.mxu0 0.0
        %1304 = vmatprep.subr.mxu0 0.0
        %1305 = vmatpush1.msra.mxu0 0.0
        %1306 = vmatprep.subr.mxu0 0.0
        %1307 = vmatpush1.msra.mxu0 0.0
        %1308 = vmatprep.subr.mxu0 0.0
        %1309 = vmatpush1.msra.mxu0 0.0
        %1310 = vmatprep.subr.mxu0 0.0
        %1311 = vmatpush1.msra.mxu0 0.0
        %1312 = vmatprep.subr.mxu0 0.0
        %1313 = vmatpush1.msra.mxu0 0.0
        %1314 = vmatprep.subr.mxu0 0.0
        %1315 = vmatpush1.msra.mxu0 0.0
        %1316 = vmatprep.subr.mxu0 0.0
        %1317 = vmatpush1.msra.mxu0 0.0
        %1318 = vmatprep.subr.mxu0 0.0
        %1319 = vmatpush1.msra.mxu0 0.0
        %1320 = vmatprep.subr.mxu0 0.0
        %1321 = vmatpush1.msra.mxu0 0.0
        %1322 = vmatprep.subr.mxu0 0.0
        %1323 = vmatpush1.msra.mxu0 0.0
        %1324 = vmatprep.mubr.f32.mxu0 0.0
        %v1325 = vand.u32 %v361, 4294901760
        %1326 = vmatmul.mubr.f32.gmra.mrb[0].mxu0 %v1325
        %v1327 = vpop.f32.mrb[0].mxu0
        %v1328 = vadd.f32 %v1113, %v1327
        %v1329 = vpop.f32.mrb[0].mxu0
        %1330 = vmatprep.mubr.f32.mxu0 0.0
        %v1331 = vand.u32 %v364, 4294901760
        %1332 = vmatmul.mubr.f32.gmra.mrb[0].mxu0 %v1331
        %v1333 = vpop.f32.mrb[0].mxu0
        %v1334 = vadd.f32 %v1121, %v1333
        %v1335 = vpop.f32.mrb[0].mxu0
        %1336 = vmatprep.mubr.f32.mxu0 0.0
        %v1337 = vand.u32 %v367, 4294901760
        %1338 = vmatmul.mubr.f32.gmra.mrb[0].mxu0 %v1337
        %v1339 = vpop.f32.mrb[0].mxu0
        %v1340 = vadd.f32 %v1129, %v1339
        %v1341 = vpop.f32.mrb[0].mxu0
        %1342 = vmatprep.mubr.f32.mxu0 0.0
        %v1343 = vand.u32 %v370, 4294901760
        %1344 = vmatmul.mubr.f32.gmra.mrb[0].mxu0 %v1343
        %v1345 = vpop.f32.mrb[0].mxu0
        %v1346 = vadd.f32 %v1137, %v1345
        %v1347 = vpop.f32.mrb[0].mxu0
        %1348 = vmatprep.mubr.f32.mxu0 0.0
        %v1349 = vand.u32 %v373, 4294901760
        %1350 = vmatmul.mubr.f32.gmra.mrb[0].mxu0 %v1349
        %v1351 = vpop.f32.mrb[0].mxu0
        %v1352 = vadd.f32 %v1145, %v1351
        %v1353 = vpop.f32.mrb[0].mxu0
        %1354 = vmatprep.mubr.f32.mxu0 0.0
        %v1355 = vand.u32 %v376, 4294901760
        %1356 = vmatmul.mubr.f32.gmra.mrb[0].mxu0 %v1355
        %v1357 = vpop.f32.mrb[0].mxu0
        %v1358 = vadd.f32 %v1153, %v1357
        %v1359 = vpop.f32.mrb[0].mxu0
        %1360 = vmatprep.mubr.f32.mxu0 0.0
        %v1361 = vand.u32 %v379, 4294901760
        %1362 = vmatmul.mubr.f32.gmra.mrb[0].mxu0 %v1361
        %v1363 = vpop.f32.mrb[0].mxu0
        %v1364 = vadd.f32 %v1161, %v1363
        %v1365 = vpop.f32.mrb[0].mxu0
        %1366 = vmatprep.mubr.f32.mxu0 0.0
        %v1367 = vand.u32 %v382, 4294901760
        %1368 = vmatmul.mubr.f32.gmra.mrb[0].mxu0 %v1367
        %v1369 = vpop.f32.mrb[0].mxu0
        %v1370 = vadd.f32 %v1169, %v1369
        %v1371 = vpop.f32.mrb[0].mxu0
        %1372 = vmatprep.mubr.f32.mxu0 0.0
        %v1373 = vand.u32 %v385, 4294901760
        %1374 = vmatmul.mubr.f32.gmra.mrb[0].mxu0 %v1373
        %v1375 = vpop.f32.mrb[0].mxu0
        %v1376 = vadd.f32 %v1177, %v1375
        %v1377 = vpop.f32.mrb[0].mxu0
        %1378 = vmatprep.mubr.f32.mxu0 0.0
        %v1379 = vand.u32 %v388, 4294901760
        %1380 = vmatmul.mubr.f32.gmra.mrb[0].mxu0 %v1379
        %v1381 = vpop.f32.mrb[0].mxu0
        %v1382 = vadd.f32 %v1185, %v1381
        %v1383 = vpop.f32.mrb[0].mxu0
        %1384 = vmatprep.mubr.f32.mxu0 0.0
        %v1385 = vand.u32 %v391, 4294901760
        %1386 = vmatmul.mubr.f32.gmra.mrb[0].mxu0 %v1385
        %v1387 = vpop.f32.mrb[0].mxu0
        %v1388 = vadd.f32 %v1193, %v1387
        %v1389 = vpop.f32.mrb[0].mxu0
        %1390 = vmatprep.mubr.f32.mxu0 0.0
        %v1391 = vand.u32 %v394, 4294901760
        %1392 = vmatmul.mubr.f32.gmra.mrb[0].mxu0 %v1391
        %v1393 = vpop.f32.mrb[0].mxu0
        %v1394 = vadd.f32 %v1201, %v1393
        %v1395 = vpop.f32.mrb[0].mxu0
        %1396 = vmatprep.mubr.f32.mxu0 0.0
        %v1397 = vand.u32 %v397, 4294901760
        %1398 = vmatmul.mubr.f32.gmra.mrb[0].mxu0 %v1397
        %v1399 = vpop.f32.mrb[0].mxu0
        %v1400 = vadd.f32 %v1209, %v1399
        %v1401 = vpop.f32.mrb[0].mxu0
        %1402 = vmatprep.mubr.f32.mxu0 0.0
        %v1403 = vand.u32 %v400, 4294901760
        %1404 = vmatmul.mubr.f32.gmra.mrb[0].mxu0 %v1403
        %v1405 = vpop.f32.mrb[0].mxu0
        %v1406 = vadd.f32 %v1217, %v1405
        %v1407 = vpop.f32.mrb[0].mxu0
        %1408 = vmatprep.mubr.f32.mxu0 0.0
        %v1409 = vand.u32 %v403, 4294901760
        %1410 = vmatmul.mubr.f32.gmra.mrb[0].mxu0 %v1409
        %v1411 = vpop.f32.mrb[0].mxu0
        %v1412 = vadd.f32 %v1225, %v1411
        %v1413 = vpop.f32.mrb[0].mxu0
        %1414 = vmatprep.mubr.f32.mxu0 0.0
        %v1415 = vand.u32 %v406, 4294901760
        %1416 = vmatmul.mubr.f32.gmra.mrb[0].mxu0 %v1415
        %v1417 = vpop.f32.mrb[0].mxu0
        %v1418 = vadd.f32 %v1233, %v1417
        %v1419 = vpop.f32.mrb[0].mxu0
        %1420 = vdwg.mxu0
        %1421 = vmatprep.subr.mxu0 0.0
        %v1422 = vand.u32 %v283, 4294901760
        %1423 = vmatpush1.msra.mxu0 %v1422
        %1424 = vmatprep.subr.mxu0 0.0
        %v1425 = vand.u32 %v284, 4294901760
        %1426 = vmatpush1.msra.mxu0 %v1425
        %1427 = vmatprep.subr.mxu0 0.0
        %v1428 = vand.u32 %v285, 4294901760
        %1429 = vmatpush1.msra.mxu0 %v1428
        %1430 = vmatprep.subr.mxu0 0.0
        %v1431 = vand.u32 %v286, 4294901760
        %1432 = vmatpush1.msra.mxu0 %v1431
        %1433 = vmatprep.subr.mxu0 0.0
        %v1434 = vand.u32 %v287, 4294901760
        %1435 = vmatpush1.msra.mxu0 %v1434
        %1436 = vmatprep.subr.mxu0 0.0
        %v1437 = vand.u32 %v288, 4294901760
        %1438 = vmatpush1.msra.mxu0 %v1437
        %1439 = vmatprep.subr.mxu0 0.0
        %v1440 = vand.u32 %v289, 4294901760
        %1441 = vmatpush1.msra.mxu0 %v1440
        %1442 = vmatprep.subr.mxu0 0.0
        %v1443 = vand.u32 %v290, 4294901760
        %1444 = vmatpush1.msra.mxu0 %v1443
        %1445 = vmatprep.subr.mxu0 0.0
        %1446 = vmatpush1.msra.mxu0 0.0
        %1447 = vmatprep.subr.mxu0 0.0
        %1448 = vmatpush1.msra.mxu0 0.0
        %1449 = vmatprep.subr.mxu0 0.0
        %1450 = vmatpush1.msra.mxu0 0.0
        %1451 = vmatprep.subr.mxu0 0.0
        %1452 = vmatpush1.msra.mxu0 0.0
        %1453 = vmatprep.subr.mxu0 0.0
        %1454 = vmatpush1.msra.mxu0 0.0
        %1455 = vmatprep.subr.mxu0 0.0
        %1456 = vmatpush1.msra.mxu0 0.0
        %1457 = vmatprep.subr.mxu0 0.0
        %1458 = vmatpush1.msra.mxu0 0.0
        %1459 = vmatprep.subr.mxu0 0.0
        %1460 = vmatpush1.msra.mxu0 0.0
        %1461 = vmatprep.subr.mxu0 0.0
        %1462 = vmatpush1.msra.mxu0 0.0
        %1463 = vmatprep.subr.mxu0 0.0
        %1464 = vmatpush1.msra.mxu0 0.0
        %1465 = vmatprep.subr.mxu0 0.0
        %1466 = vmatpush1.msra.mxu0 0.0
        %1467 = vmatprep.subr.mxu0 0.0
        %1468 = vmatpush1.msra.mxu0 0.0
        %1469 = vmatprep.subr.mxu0 0.0
        %1470 = vmatpush1.msra.mxu0 0.0
        %1471 = vmatprep.subr.mxu0 0.0
        %1472 = vmatpush1.msra.mxu0 0.0
        %1473 = vmatprep.subr.mxu0 0.0
        %1474 = vmatpush1.msra.mxu0 0.0
        %1475 = vmatprep.subr.mxu0 0.0
        %1476 = vmatpush1.msra.mxu0 0.0
        %1477 = vmatprep.subr.mxu0 0.0
        %1478 = vmatpush1.msra.mxu0 0.0
        %1479 = vmatprep.subr.mxu0 0.0
        %1480 = vmatpush1.msra.mxu0 0.0
        %1481 = vmatprep.subr.mxu0 0.0
        %1482 = vmatpush1.msra.mxu0 0.0
        %1483 = vmatprep.subr.mxu0 0.0
        %1484 = vmatpush1.msra.mxu0 0.0
        %1485 = vmatprep.subr.mxu0 0.0
        %1486 = vmatpush1.msra.mxu0 0.0
        %1487 = vmatprep.subr.mxu0 0.0
        %1488 = vmatpush1.msra.mxu0 0.0
        %1489 = vmatprep.subr.mxu0 0.0
        %1490 = vmatpush1.msra.mxu0 0.0
        %1491 = vmatprep.subr.mxu0 0.0
        %1492 = vmatpush1.msra.mxu0 0.0
        %1493 = vmatprep.mubr.f32.mxu0 0.0
        %v1494 = vand.u32 %v361, 4294901760
        %1495 = vmatmul.mubr.f32.gmra.mrb[0].mxu0 %v1494
        %v1496 = vpop.f32.mrb[0].mxu0
        %v1497 = vadd.f32 %v1328, %v1496
        %v1498 = vpop.f32.mrb[0].mxu0
        %1499 = vmatprep.mubr.f32.mxu0 0.0
        %v1500 = vand.u32 %v364, 4294901760
        %1501 = vmatmul.mubr.f32.gmra.mrb[0].mxu0 %v1500
        %v1502 = vpop.f32.mrb[0].mxu0
        %v1503 = vadd.f32 %v1334, %v1502
        %v1504 = vpop.f32.mrb[0].mxu0
        %1505 = vmatprep.mubr.f32.mxu0 0.0
        %v1506 = vand.u32 %v367, 4294901760
        %1507 = vmatmul.mubr.f32.gmra.mrb[0].mxu0 %v1506
        %v1508 = vpop.f32.mrb[0].mxu0
        %v1509 = vadd.f32 %v1340, %v1508
        %v1510 = vpop.f32.mrb[0].mxu0
        %1511 = vmatprep.mubr.f32.mxu0 0.0
        %v1512 = vand.u32 %v370, 4294901760
        %1513 = vmatmul.mubr.f32.gmra.mrb[0].mxu0 %v1512
        %v1514 = vpop.f32.mrb[0].mxu0
        %v1515 = vadd.f32 %v1346, %v1514
        %v1516 = vpop.f32.mrb[0].mxu0
        %1517 = vmatprep.mubr.f32.mxu0 0.0
        %v1518 = vand.u32 %v373, 4294901760
        %1519 = vmatmul.mubr.f32.gmra.mrb[0].mxu0 %v1518
        %v1520 = vpop.f32.mrb[0].mxu0
        %v1521 = vadd.f32 %v1352, %v1520
        %v1522 = vpop.f32.mrb[0].mxu0
        %1523 = vmatprep.mubr.f32.mxu0 0.0
        %v1524 = vand.u32 %v376, 4294901760
        %1525 = vmatmul.mubr.f32.gmra.mrb[0].mxu0 %v1524
        %v1526 = vpop.f32.mrb[0].mxu0
        %v1527 = vadd.f32 %v1358, %v1526
        %v1528 = vpop.f32.mrb[0].mxu0
        %1529 = vmatprep.mubr.f32.mxu0 0.0
        %v1530 = vand.u32 %v379, 4294901760
        %1531 = vmatmul.mubr.f32.gmra.mrb[0].mxu0 %v1530
        %v1532 = vpop.f32.mrb[0].mxu0
        %v1533 = vadd.f32 %v1364, %v1532
        %v1534 = vpop.f32.mrb[0].mxu0
        %1535 = vmatprep.mubr.f32.mxu0 0.0
        %v1536 = vand.u32 %v382, 4294901760
        %1537 = vmatmul.mubr.f32.gmra.mrb[0].mxu0 %v1536
        %v1538 = vpop.f32.mrb[0].mxu0
        %v1539 = vadd.f32 %v1370, %v1538
        %v1540 = vpop.f32.mrb[0].mxu0
        %1541 = vmatprep.mubr.f32.mxu0 0.0
        %v1542 = vand.u32 %v385, 4294901760
        %1543 = vmatmul.mubr.f32.gmra.mrb[0].mxu0 %v1542
        %v1544 = vpop.f32.mrb[0].mxu0
        %v1545 = vadd.f32 %v1376, %v1544
        %v1546 = vpop.f32.mrb[0].mxu0
        %1547 = vmatprep.mubr.f32.mxu0 0.0
        %v1548 = vand.u32 %v388, 4294901760
        %1549 = vmatmul.mubr.f32.gmra.mrb[0].mxu0 %v1548
        %v1550 = vpop.f32.mrb[0].mxu0
        %v1551 = vadd.f32 %v1382, %v1550
        %v1552 = vpop.f32.mrb[0].mxu0
        %1553 = vmatprep.mubr.f32.mxu0 0.0
        %v1554 = vand.u32 %v391, 4294901760
        %1555 = vmatmul.mubr.f32.gmra.mrb[0].mxu0 %v1554
        %v1556 = vpop.f32.mrb[0].mxu0
        %v1557 = vadd.f32 %v1388, %v1556
        %v1558 = vpop.f32.mrb[0].mxu0
        %1559 = vmatprep.mubr.f32.mxu0 0.0
        %v1560 = vand.u32 %v394, 4294901760
        %1561 = vmatmul.mubr.f32.gmra.mrb[0].mxu0 %v1560
        %v1562 = vpop.f32.mrb[0].mxu0
        %v1563 = vadd.f32 %v1394, %v1562
        %v1564 = vpop.f32.mrb[0].mxu0
        %1565 = vmatprep.mubr.f32.mxu0 0.0
        %v1566 = vand.u32 %v397, 4294901760
        %1567 = vmatmul.mubr.f32.gmra.mrb[0].mxu0 %v1566
        %v1568 = vpop.f32.mrb[0].mxu0
        %v1569 = vadd.f32 %v1400, %v1568
        %v1570 = vpop.f32.mrb[0].mxu0
        %1571 = vmatprep.mubr.f32.mxu0 0.0
        %v1572 = vand.u32 %v400, 4294901760
        %1573 = vmatmul.mubr.f32.gmra.mrb[0].mxu0 %v1572
        %v1574 = vpop.f32.mrb[0].mxu0
        %v1575 = vadd.f32 %v1406, %v1574
        %v1576 = vpop.f32.mrb[0].mxu0
        %1577 = vmatprep.mubr.f32.mxu0 0.0
        %v1578 = vand.u32 %v403, 4294901760
        %1579 = vmatmul.mubr.f32.gmra.mrb[0].mxu0 %v1578
        %v1580 = vpop.f32.mrb[0].mxu0
        %v1581 = vadd.f32 %v1412, %v1580
        %v1582 = vpop.f32.mrb[0].mxu0
        %1583 = vmatprep.mubr.f32.mxu0 0.0
        %v1584 = vand.u32 %v406, 4294901760
        %1585 = vmatmul.mubr.f32.gmra.mrb[0].mxu0 %v1584
        %v1586 = vpop.f32.mrb[0].mxu0
        %v1587 = vadd.f32 %v1418, %v1586
        %v1588 = vpop.f32.mrb[0].mxu0
        %1589 = vdwg.mxu0
        %v1590 = vld [vmem:[#allocation7] sm:$0xff]
        %v1591 = vld [vmem:[#allocation7 + $0x8] sm:$0xff]
        %v1592 = vld [vmem:[#allocation7 + $0x10] sm:$0xff]
        %v1593 = vld [vmem:[#allocation7 + $0x18] sm:$0xff]
        %v1594 = vld [vmem:[#allocation7 + $0x20] sm:$0xff]
        %v1595 = vld [vmem:[#allocation7 + $0x28] sm:$0xff]
        %v1596 = vld [vmem:[#allocation7 + $0x30] sm:$0xff]
        %v1597 = vld [vmem:[#allocation7 + $0x38] sm:$0xff]
        %1598 = vxpose.xlu0.b32.start [1/16] %v1590, 128
        %1599 = vxpose.xlu0.b32.cont [2/16] %v1591, 128
        %1600 = vxpose.xlu0.b32.cont [3/16] %v1592, 128
        %1601 = vxpose.xlu0.b32.cont [4/16] %v1593, 128
        %1602 = vxpose.xlu0.b32.cont [5/16] %v1594, 128
        %1603 = vxpose.xlu0.b32.cont [6/16] %v1595, 128
        %1604 = vxpose.xlu0.b32.cont [7/16] %v1596, 128
        %1605 = vxpose.xlu0.b32.cont [8/16] %v1597, 128
        %1606 = vxpose.xlu0.b32.cont [9/16] 0.0, 128
        %1607 = vxpose.xlu0.b32.cont [10/16] 0.0, 128
        %1608 = vxpose.xlu0.b32.cont [11/16] 0.0, 128
        %1609 = vxpose.xlu0.b32.cont [12/16] 0.0, 128
        %1610 = vxpose.xlu0.b32.cont [13/16] 0.0, 128
        %1611 = vxpose.xlu0.b32.cont [14/16] 0.0, 128
        %1612 = vxpose.xlu0.b32.cont [15/16] 0.0, 128
        %1613 = vxpose.xlu0.b32.end [16/16] 0.0, 128
        %v1614 = vpop.trf.xlu0
        %v1615 = vpop.trf.xlu0
        %v1616 = vpop.trf.xlu0
        %v1617 = vpop.trf.xlu0
        %v1618 = vpop.trf.xlu0
        %v1619 = vpop.trf.xlu0
        %v1620 = vpop.trf.xlu0
        %v1621 = vpop.trf.xlu0
        %v1622 = vpop.trf.xlu0
        %v1623 = vpop.trf.xlu0
        %v1624 = vpop.trf.xlu0
        %v1625 = vpop.trf.xlu0
        %v1626 = vpop.trf.xlu0
        %v1627 = vpop.trf.xlu0
        %v1628 = vpop.trf.xlu0
        %v1629 = vpop.trf.xlu0
        %v1631 = vsel %vm359, %v1614, 0
        %v1634 = vsel %vm359, %v1615, 0
        %v1637 = vsel %vm359, %v1616, 0
        %v1640 = vsel %vm359, %v1617, 0
        %v1643 = vsel %vm359, %v1618, 0
        %v1646 = vsel %vm359, %v1619, 0
        %v1649 = vsel %vm359, %v1620, 0
        %v1652 = vsel %vm359, %v1621, 0
        %v1655 = vsel %vm359, %v1622, 0
        %v1658 = vsel %vm359, %v1623, 0
        %v1661 = vsel %vm359, %v1624, 0
        %v1664 = vsel %vm359, %v1625, 0
        %v1667 = vsel %vm359, %v1626, 0
        %v1670 = vsel %vm359, %v1627, 0
        %v1673 = vsel %vm359, %v1628, 0
        %v1676 = vsel %vm359, %v1629, 0
        %1678 = vmatprep.subr.mxu0 0.0
        %v1679 = vand.u32 %v311, 4294901760
        %1680 = vmatpush1.msra.mxu0 %v1679
        %1681 = vmatprep.subr.mxu0 0.0
        %v1682 = vand.u32 %v312, 4294901760
        %1683 = vmatpush1.msra.mxu0 %v1682
        %1684 = vmatprep.subr.mxu0 0.0
        %v1685 = vand.u32 %v313, 4294901760
        %1686 = vmatpush1.msra.mxu0 %v1685
        %1687 = vmatprep.subr.mxu0 0.0
        %v1688 = vand.u32 %v314, 4294901760
        %1689 = vmatpush1.msra.mxu0 %v1688
        %1690 = vmatprep.subr.mxu0 0.0
        %v1691 = vand.u32 %v315, 4294901760
        %1692 = vmatpush1.msra.mxu0 %v1691
        %1693 = vmatprep.subr.mxu0 0.0
        %v1694 = vand.u32 %v316, 4294901760
        %1695 = vmatpush1.msra.mxu0 %v1694
        %1696 = vmatprep.subr.mxu0 0.0
        %v1697 = vand.u32 %v317, 4294901760
        %1698 = vmatpush1.msra.mxu0 %v1697
        %1699 = vmatprep.subr.mxu0 0.0
        %v1700 = vand.u32 %v318, 4294901760
        %1701 = vmatpush1.msra.mxu0 %v1700
        %1702 = vmatprep.subr.mxu0 0.0
        %1703 = vmatpush1.msra.mxu0 0.0
        %1704 = vmatprep.subr.mxu0 0.0
        %1705 = vmatpush1.msra.mxu0 0.0
        %1706 = vmatprep.subr.mxu0 0.0
        %1707 = vmatpush1.msra.mxu0 0.0
        %1708 = vmatprep.subr.mxu0 0.0
        %1709 = vmatpush1.msra.mxu0 0.0
        %1710 = vmatprep.subr.mxu0 0.0
        %1711 = vmatpush1.msra.mxu0 0.0
        %1712 = vmatprep.subr.mxu0 0.0
        %1713 = vmatpush1.msra.mxu0 0.0
        %1714 = vmatprep.subr.mxu0 0.0
        %1715 = vmatpush1.msra.mxu0 0.0
        %1716 = vmatprep.subr.mxu0 0.0
        %1717 = vmatpush1.msra.mxu0 0.0
        %1718 = vmatprep.subr.mxu0 0.0
        %1719 = vmatpush1.msra.mxu0 0.0
        %1720 = vmatprep.subr.mxu0 0.0
        %1721 = vmatpush1.msra.mxu0 0.0
        %1722 = vmatprep.subr.mxu0 0.0
        %1723 = vmatpush1.msra.mxu0 0.0
        %1724 = vmatprep.subr.mxu0 0.0
        %1725 = vmatpush1.msra.mxu0 0.0
        %1726 = vmatprep.subr.mxu0 0.0
        %1727 = vmatpush1.msra.mxu0 0.0
        %1728 = vmatprep.subr.mxu0 0.0
        %1729 = vmatpush1.msra.mxu0 0.0
        %1730 = vmatprep.subr.mxu0 0.0
        %1731 = vmatpush1.msra.mxu0 0.0
        %1732 = vmatprep.subr.mxu0 0.0
        %1733 = vmatpush1.msra.mxu0 0.0
        %1734 = vmatprep.subr.mxu0 0.0
        %1735 = vmatpush1.msra.mxu0 0.0
        %1736 = vmatprep.subr.mxu0 0.0
        %1737 = vmatpush1.msra.mxu0 0.0
        %1738 = vmatprep.subr.mxu0 0.0
        %1739 = vmatpush1.msra.mxu0 0.0
        %1740 = vmatprep.subr.mxu0 0.0
        %1741 = vmatpush1.msra.mxu0 0.0
        %1742 = vmatprep.subr.mxu0 0.0
        %1743 = vmatpush1.msra.mxu0 0.0
        %1744 = vmatprep.subr.mxu0 0.0
        %1745 = vmatpush1.msra.mxu0 0.0
        %1746 = vmatprep.subr.mxu0 0.0
        %1747 = vmatpush1.msra.mxu0 0.0
        %1748 = vmatprep.subr.mxu0 0.0
        %1749 = vmatpush1.msra.mxu0 0.0
        %1750 = vmatprep.mubr.f32.mxu0 0.0
        %v1751 = vand.u32 %v1631, 4294901760
        %v1752 = vsub.f32 %v1631, %v1751
        %v1753 = vand.u32 %v1752, 4294901760
        %v1754 = vsub.f32 %v1752, %v1753
        %v1755 = vand.u32 %v1754, 4294901760
        %1756 = vmatmul.mubr.f32.gmra.mrb[0].mxu0 %v1755
        %v1757 = vpop.f32.mrb[0].mxu0
        %v1758 = vadd.f32 0.0, %v1757
        %v1759 = vpop.f32.mrb[0].mxu0
        %1760 = vmatprep.mubr.f32.mxu0 0.0
        %v1761 = vand.u32 %v1634, 4294901760
        %v1762 = vsub.f32 %v1634, %v1761
        %v1763 = vand.u32 %v1762, 4294901760
        %v1764 = vsub.f32 %v1762, %v1763
        %v1765 = vand.u32 %v1764, 4294901760
        %1766 = vmatmul.mubr.f32.gmra.mrb[0].mxu0 %v1765
        %v1767 = vpop.f32.mrb[0].mxu0
        %v1768 = vadd.f32 0.0, %v1767
        %v1769 = vpop.f32.mrb[0].mxu0
        %1770 = vmatprep.mubr.f32.mxu0 0.0
        %v1771 = vand.u32 %v1637, 4294901760
        %v1772 = vsub.f32 %v1637, %v1771
        %v1773 = vand.u32 %v1772, 4294901760
        %v1774 = vsub.f32 %v1772, %v1773
        %v1775 = vand.u32 %v1774, 4294901760
        %1776 = vmatmul.mubr.f32.gmra.mrb[0].mxu0 %v1775
        %v1777 = vpop.f32.mrb[0].mxu0
        %v1778 = vadd.f32 0.0, %v1777
        %v1779 = vpop.f32.mrb[0].mxu0
        %1780 = vmatprep.mubr.f32.mxu0 0.0
        %v1781 = vand.u32 %v1640, 4294901760
        %v1782 = vsub.f32 %v1640, %v1781
        %v1783 = vand.u32 %v1782, 4294901760
        %v1784 = vsub.f32 %v1782, %v1783
        %v1785 = vand.u32 %v1784, 4294901760
        %1786 = vmatmul.mubr.f32.gmra.mrb[0].mxu0 %v1785
        %v1787 = vpop.f32.mrb[0].mxu0
        %v1788 = vadd.f32 0.0, %v1787
        %v1789 = vpop.f32.mrb[0].mxu0
        %1790 = vmatprep.mubr.f32.mxu0 0.0
        %v1791 = vand.u32 %v1643, 4294901760
        %v1792 = vsub.f32 %v1643, %v1791
        %v1793 = vand.u32 %v1792, 4294901760
        %v1794 = vsub.f32 %v1792, %v1793
        %v1795 = vand.u32 %v1794, 4294901760
        %1796 = vmatmul.mubr.f32.gmra.mrb[0].mxu0 %v1795
        %v1797 = vpop.f32.mrb[0].mxu0
        %v1798 = vadd.f32 0.0, %v1797
        %v1799 = vpop.f32.mrb[0].mxu0
        %1800 = vmatprep.mubr.f32.mxu0 0.0
        %v1801 = vand.u32 %v1646, 4294901760
        %v1802 = vsub.f32 %v1646, %v1801
        %v1803 = vand.u32 %v1802, 4294901760
        %v1804 = vsub.f32 %v1802, %v1803
        %v1805 = vand.u32 %v1804, 4294901760
        %1806 = vmatmul.mubr.f32.gmra.mrb[0].mxu0 %v1805
        %v1807 = vpop.f32.mrb[0].mxu0
        %v1808 = vadd.f32 0.0, %v1807
        %v1809 = vpop.f32.mrb[0].mxu0
        %1810 = vmatprep.mubr.f32.mxu0 0.0
        %v1811 = vand.u32 %v1649, 4294901760
        %v1812 = vsub.f32 %v1649, %v1811
        %v1813 = vand.u32 %v1812, 4294901760
        %v1814 = vsub.f32 %v1812, %v1813
        %v1815 = vand.u32 %v1814, 4294901760
        %1816 = vmatmul.mubr.f32.gmra.mrb[0].mxu0 %v1815
        %v1817 = vpop.f32.mrb[0].mxu0
        %v1818 = vadd.f32 0.0, %v1817
        %v1819 = vpop.f32.mrb[0].mxu0
        %1820 = vmatprep.mubr.f32.mxu0 0.0
        %v1821 = vand.u32 %v1652, 4294901760
        %v1822 = vsub.f32 %v1652, %v1821
        %v1823 = vand.u32 %v1822, 4294901760
        %v1824 = vsub.f32 %v1822, %v1823
        %v1825 = vand.u32 %v1824, 4294901760
        %1826 = vmatmul.mubr.f32.gmra.mrb[0].mxu0 %v1825
        %v1827 = vpop.f32.mrb[0].mxu0
        %v1828 = vadd.f32 0.0, %v1827
        %v1829 = vpop.f32.mrb[0].mxu0
        %1830 = vmatprep.mubr.f32.mxu0 0.0
        %v1831 = vand.u32 %v1655, 4294901760
        %v1832 = vsub.f32 %v1655, %v1831
        %v1833 = vand.u32 %v1832, 4294901760
        %v1834 = vsub.f32 %v1832, %v1833
        %v1835 = vand.u32 %v1834, 4294901760
        %1836 = vmatmul.mubr.f32.gmra.mrb[0].mxu0 %v1835
        %v1837 = vpop.f32.mrb[0].mxu0
        %v1838 = vadd.f32 0.0, %v1837
        %v1839 = vpop.f32.mrb[0].mxu0
        %1840 = vmatprep.mubr.f32.mxu0 0.0
        %v1841 = vand.u32 %v1658, 4294901760
        %v1842 = vsub.f32 %v1658, %v1841
        %v1843 = vand.u32 %v1842, 4294901760
        %v1844 = vsub.f32 %v1842, %v1843
        %v1845 = vand.u32 %v1844, 4294901760
        %1846 = vmatmul.mubr.f32.gmra.mrb[0].mxu0 %v1845
        %v1847 = vpop.f32.mrb[0].mxu0
        %v1848 = vadd.f32 0.0, %v1847
        %v1849 = vpop.f32.mrb[0].mxu0
        %1850 = vmatprep.mubr.f32.mxu0 0.0
        %v1851 = vand.u32 %v1661, 4294901760
        %v1852 = vsub.f32 %v1661, %v1851
        %v1853 = vand.u32 %v1852, 4294901760
        %v1854 = vsub.f32 %v1852, %v1853
        %v1855 = vand.u32 %v1854, 4294901760
        %1856 = vmatmul.mubr.f32.gmra.mrb[0].mxu0 %v1855
        %v1857 = vpop.f32.mrb[0].mxu0
        %v1858 = vadd.f32 0.0, %v1857
        %v1859 = vpop.f32.mrb[0].mxu0
        %1860 = vmatprep.mubr.f32.mxu0 0.0
        %v1861 = vand.u32 %v1664, 4294901760
        %v1862 = vsub.f32 %v1664, %v1861
        %v1863 = vand.u32 %v1862, 4294901760
        %v1864 = vsub.f32 %v1862, %v1863
        %v1865 = vand.u32 %v1864, 4294901760
        %1866 = vmatmul.mubr.f32.gmra.mrb[0].mxu0 %v1865
        %v1867 = vpop.f32.mrb[0].mxu0
        %v1868 = vadd.f32 0.0, %v1867
        %v1869 = vpop.f32.mrb[0].mxu0
        %1870 = vmatprep.mubr.f32.mxu0 0.0
        %v1871 = vand.u32 %v1667, 4294901760
        %v1872 = vsub.f32 %v1667, %v1871
        %v1873 = vand.u32 %v1872, 4294901760
        %v1874 = vsub.f32 %v1872, %v1873
        %v1875 = vand.u32 %v1874, 4294901760
        %1876 = vmatmul.mubr.f32.gmra.mrb[0].mxu0 %v1875
        %v1877 = vpop.f32.mrb[0].mxu0
        %v1878 = vadd.f32 0.0, %v1877
        %v1879 = vpop.f32.mrb[0].mxu0
        %1880 = vmatprep.mubr.f32.mxu0 0.0
        %v1881 = vand.u32 %v1670, 4294901760
        %v1882 = vsub.f32 %v1670, %v1881
        %v1883 = vand.u32 %v1882, 4294901760
        %v1884 = vsub.f32 %v1882, %v1883
        %v1885 = vand.u32 %v1884, 4294901760
        %1886 = vmatmul.mubr.f32.gmra.mrb[0].mxu0 %v1885
        %v1887 = vpop.f32.mrb[0].mxu0
        %v1888 = vadd.f32 0.0, %v1887
        %v1889 = vpop.f32.mrb[0].mxu0
        %1890 = vmatprep.mubr.f32.mxu0 0.0
        %v1891 = vand.u32 %v1673, 4294901760
        %v1892 = vsub.f32 %v1673, %v1891
        %v1893 = vand.u32 %v1892, 4294901760
        %v1894 = vsub.f32 %v1892, %v1893
        %v1895 = vand.u32 %v1894, 4294901760
        %1896 = vmatmul.mubr.f32.gmra.mrb[0].mxu0 %v1895
        %v1897 = vpop.f32.mrb[0].mxu0
        %v1898 = vadd.f32 0.0, %v1897
        %v1899 = vpop.f32.mrb[0].mxu0
        %1900 = vmatprep.mubr.f32.mxu0 0.0
        %v1901 = vand.u32 %v1676, 4294901760
        %v1902 = vsub.f32 %v1676, %v1901
        %v1903 = vand.u32 %v1902, 4294901760
        %v1904 = vsub.f32 %v1902, %v1903
        %v1905 = vand.u32 %v1904, 4294901760
        %1906 = vmatmul.mubr.f32.gmra.mrb[0].mxu0 %v1905
        %v1907 = vpop.f32.mrb[0].mxu0
        %v1908 = vadd.f32 0.0, %v1907
        %v1909 = vpop.f32.mrb[0].mxu0
        %1910 = vdwg.mxu0
        %1911 = vmatprep.subr.mxu0 0.0
        %v1912 = vand.u32 %v311, 4294901760
        %v1913 = vsub.f32 %v311, %v1912
        %v1914 = vand.u32 %v1913, 4294901760
        %v1915 = vsub.f32 %v1913, %v1914
        %v1916 = vand.u32 %v1915, 4294901760
        %1917 = vmatpush1.msra.mxu0 %v1916
        %1918 = vmatprep.subr.mxu0 0.0
        %v1919 = vand.u32 %v312, 4294901760
        %v1920 = vsub.f32 %v312, %v1919
        %v1921 = vand.u32 %v1920, 4294901760
        %v1922 = vsub.f32 %v1920, %v1921
        %v1923 = vand.u32 %v1922, 4294901760
        %1924 = vmatpush1.msra.mxu0 %v1923
        %1925 = vmatprep.subr.mxu0 0.0
        %v1926 = vand.u32 %v313, 4294901760
        %v1927 = vsub.f32 %v313, %v1926
        %v1928 = vand.u32 %v1927, 4294901760
        %v1929 = vsub.f32 %v1927, %v1928
        %v1930 = vand.u32 %v1929, 4294901760
        %1931 = vmatpush1.msra.mxu0 %v1930
        %1932 = vmatprep.subr.mxu0 0.0
        %v1933 = vand.u32 %v314, 4294901760
        %v1934 = vsub.f32 %v314, %v1933
        %v1935 = vand.u32 %v1934, 4294901760
        %v1936 = vsub.f32 %v1934, %v1935
        %v1937 = vand.u32 %v1936, 4294901760
        %1938 = vmatpush1.msra.mxu0 %v1937
        %1939 = vmatprep.subr.mxu0 0.0
        %v1940 = vand.u32 %v315, 4294901760
        %v1941 = vsub.f32 %v315, %v1940
        %v1942 = vand.u32 %v1941, 4294901760
        %v1943 = vsub.f32 %v1941, %v1942
        %v1944 = vand.u32 %v1943, 4294901760
        %1945 = vmatpush1.msra.mxu0 %v1944
        %1946 = vmatprep.subr.mxu0 0.0
        %v1947 = vand.u32 %v316, 4294901760
        %v1948 = vsub.f32 %v316, %v1947
        %v1949 = vand.u32 %v1948, 4294901760
        %v1950 = vsub.f32 %v1948, %v1949
        %v1951 = vand.u32 %v1950, 4294901760
        %1952 = vmatpush1.msra.mxu0 %v1951
        %1953 = vmatprep.subr.mxu0 0.0
        %v1954 = vand.u32 %v317, 4294901760
        %v1955 = vsub.f32 %v317, %v1954
        %v1956 = vand.u32 %v1955, 4294901760
        %v1957 = vsub.f32 %v1955, %v1956
        %v1958 = vand.u32 %v1957, 4294901760
        %1959 = vmatpush1.msra.mxu0 %v1958
        %1960 = vmatprep.subr.mxu0 0.0
        %v1961 = vand.u32 %v318, 4294901760
        %v1962 = vsub.f32 %v318, %v1961
        %v1963 = vand.u32 %v1962, 4294901760
        %v1964 = vsub.f32 %v1962, %v1963
        %v1965 = vand.u32 %v1964, 4294901760
        %1966 = vmatpush1.msra.mxu0 %v1965
        %1967 = vmatprep.subr.mxu0 0.0
        %1968 = vmatpush1.msra.mxu0 0.0
        %1969 = vmatprep.subr.mxu0 0.0
        %1970 = vmatpush1.msra.mxu0 0.0
        %1971 = vmatprep.subr.mxu0 0.0
        %1972 = vmatpush1.msra.mxu0 0.0
        %1973 = vmatprep.subr.mxu0 0.0
        %1974 = vmatpush1.msra.mxu0 0.0
        %1975 = vmatprep.subr.mxu0 0.0
        %1976 = vmatpush1.msra.mxu0 0.0
        %1977 = vmatprep.subr.mxu0 0.0
        %1978 = vmatpush1.msra.mxu0 0.0
        %1979 = vmatprep.subr.mxu0 0.0
        %1980 = vmatpush1.msra.mxu0 0.0
        %1981 = vmatprep.subr.mxu0 0.0
        %1982 = vmatpush1.msra.mxu0 0.0
        %1983 = vmatprep.subr.mxu0 0.0
        %1984 = vmatpush1.msra.mxu0 0.0
        %1985 = vmatprep.subr.mxu0 0.0
        %1986 = vmatpush1.msra.mxu0 0.0
        %1987 = vmatprep.subr.mxu0 0.0
        %1988 = vmatpush1.msra.mxu0 0.0
        %1989 = vmatprep.subr.mxu0 0.0
        %1990 = vmatpush1.msra.mxu0 0.0
        %1991 = vmatprep.subr.mxu0 0.0
        %1992 = vmatpush1.msra.mxu0 0.0
        %1993 = vmatprep.subr.mxu0 0.0
        %1994 = vmatpush1.msra.mxu0 0.0
        %1995 = vmatprep.subr.mxu0 0.0
        %1996 = vmatpush1.msra.mxu0 0.0
        %1997 = vmatprep.subr.mxu0 0.0
        %1998 = vmatpush1.msra.mxu0 0.0
        %1999 = vmatprep.subr.mxu0 0.0
        %2000 = vmatpush1.msra.mxu0 0.0
        %2001 = vmatprep.subr.mxu0 0.0
        %2002 = vmatpush1.msra.mxu0 0.0
        %2003 = vmatprep.subr.mxu0 0.0
        %2004 = vmatpush1.msra.mxu0 0.0
        %2005 = vmatprep.subr.mxu0 0.0
        %2006 = vmatpush1.msra.mxu0 0.0
        %2007 = vmatprep.subr.mxu0 0.0
        %2008 = vmatpush1.msra.mxu0 0.0
        %2009 = vmatprep.subr.mxu0 0.0
        %2010 = vmatpush1.msra.mxu0 0.0
        %2011 = vmatprep.subr.mxu0 0.0
        %2012 = vmatpush1.msra.mxu0 0.0
        %2013 = vmatprep.subr.mxu0 0.0
        %2014 = vmatpush1.msra.mxu0 0.0
        %2015 = vmatprep.mubr.f32.mxu0 0.0
        %v2016 = vand.u32 %v1631, 4294901760
        %2017 = vmatmul.mubr.f32.gmra.mrb[0].mxu0 %v2016
        %v2018 = vpop.f32.mrb[0].mxu0
        %v2019 = vadd.f32 %v1758, %v2018
        %v2020 = vpop.f32.mrb[0].mxu0
        %2021 = vmatprep.mubr.f32.mxu0 0.0
        %v2022 = vand.u32 %v1634, 4294901760
        %2023 = vmatmul.mubr.f32.gmra.mrb[0].mxu0 %v2022
        %v2024 = vpop.f32.mrb[0].mxu0
        %v2025 = vadd.f32 %v1768, %v2024
        %v2026 = vpop.f32.mrb[0].mxu0
        %2027 = vmatprep.mubr.f32.mxu0 0.0
        %v2028 = vand.u32 %v1637, 4294901760
        %2029 = vmatmul.mubr.f32.gmra.mrb[0].mxu0 %v2028
        %v2030 = vpop.f32.mrb[0].mxu0
        %v2031 = vadd.f32 %v1778, %v2030
        %v2032 = vpop.f32.mrb[0].mxu0
        %2033 = vmatprep.mubr.f32.mxu0 0.0
        %v2034 = vand.u32 %v1640, 4294901760
        %2035 = vmatmul.mubr.f32.gmra.mrb[0].mxu0 %v2034
        %v2036 = vpop.f32.mrb[0].mxu0
        %v2037 = vadd.f32 %v1788, %v2036
        %v2038 = vpop.f32.mrb[0].mxu0
        %2039 = vmatprep.mubr.f32.mxu0 0.0
        %v2040 = vand.u32 %v1643, 4294901760
        %2041 = vmatmul.mubr.f32.gmra.mrb[0].mxu0 %v2040
        %v2042 = vpop.f32.mrb[0].mxu0
        %v2043 = vadd.f32 %v1798, %v2042
        %v2044 = vpop.f32.mrb[0].mxu0
        %2045 = vmatprep.mubr.f32.mxu0 0.0
        %v2046 = vand.u32 %v1646, 4294901760
        %2047 = vmatmul.mubr.f32.gmra.mrb[0].mxu0 %v2046
        %v2048 = vpop.f32.mrb[0].mxu0
        %v2049 = vadd.f32 %v1808, %v2048
        %v2050 = vpop.f32.mrb[0].mxu0
        %2051 = vmatprep.mubr.f32.mxu0 0.0
        %v2052 = vand.u32 %v1649, 4294901760
        %2053 = vmatmul.mubr.f32.gmra.mrb[0].mxu0 %v2052
        %v2054 = vpop.f32.mrb[0].mxu0
        %v2055 = vadd.f32 %v1818, %v2054
        %v2056 = vpop.f32.mrb[0].mxu0
        %2057 = vmatprep.mubr.f32.mxu0 0.0
        %v2058 = vand.u32 %v1652, 4294901760
        %2059 = vmatmul.mubr.f32.gmra.mrb[0].mxu0 %v2058
        %v2060 = vpop.f32.mrb[0].mxu0
        %v2061 = vadd.f32 %v1828, %v2060
        %v2062 = vpop.f32.mrb[0].mxu0
        %2063 = vmatprep.mubr.f32.mxu0 0.0
        %v2064 = vand.u32 %v1655, 4294901760
        %2065 = vmatmul.mubr.f32.gmra.mrb[0].mxu0 %v2064
        %v2066 = vpop.f32.mrb[0].mxu0
        %v2067 = vadd.f32 %v1838, %v2066
        %v2068 = vpop.f32.mrb[0].mxu0
        %2069 = vmatprep.mubr.f32.mxu0 0.0
        %v2070 = vand.u32 %v1658, 4294901760
        %2071 = vmatmul.mubr.f32.gmra.mrb[0].mxu0 %v2070
        %v2072 = vpop.f32.mrb[0].mxu0
        %v2073 = vadd.f32 %v1848, %v2072
        %v2074 = vpop.f32.mrb[0].mxu0
        %2075 = vmatprep.mubr.f32.mxu0 0.0
        %v2076 = vand.u32 %v1661, 4294901760
        %2077 = vmatmul.mubr.f32.gmra.mrb[0].mxu0 %v2076
        %v2078 = vpop.f32.mrb[0].mxu0
        %v2079 = vadd.f32 %v1858, %v2078
        %v2080 = vpop.f32.mrb[0].mxu0
        %2081 = vmatprep.mubr.f32.mxu0 0.0
        %v2082 = vand.u32 %v1664, 4294901760
        %2083 = vmatmul.mubr.f32.gmra.mrb[0].mxu0 %v2082
        %v2084 = vpop.f32.mrb[0].mxu0
        %v2085 = vadd.f32 %v1868, %v2084
        %v2086 = vpop.f32.mrb[0].mxu0
        %2087 = vmatprep.mubr.f32.mxu0 0.0
        %v2088 = vand.u32 %v1667, 4294901760
        %2089 = vmatmul.mubr.f32.gmra.mrb[0].mxu0 %v2088
        %v2090 = vpop.f32.mrb[0].mxu0
        %v2091 = vadd.f32 %v1878, %v2090
        %v2092 = vpop.f32.mrb[0].mxu0
        %2093 = vmatprep.mubr.f32.mxu0 0.0
        %v2094 = vand.u32 %v1670, 4294901760
        %2095 = vmatmul.mubr.f32.gmra.mrb[0].mxu0 %v2094
        %v2096 = vpop.f32.mrb[0].mxu0
        %v2097 = vadd.f32 %v1888, %v2096
        %v2098 = vpop.f32.mrb[0].mxu0
        %2099 = vmatprep.mubr.f32.mxu0 0.0
        %v2100 = vand.u32 %v1673, 4294901760
        %2101 = vmatmul.mubr.f32.gmra.mrb[0].mxu0 %v2100
        %v2102 = vpop.f32.mrb[0].mxu0
        %v2103 = vadd.f32 %v1898, %v2102
        %v2104 = vpop.f32.mrb[0].mxu0
        %2105 = vmatprep.mubr.f32.mxu0 0.0
        %v2106 = vand.u32 %v1676, 4294901760
        %2107 = vmatmul.mubr.f32.gmra.mrb[0].mxu0 %v2106
        %v2108 = vpop.f32.mrb[0].mxu0
        %v2109 = vadd.f32 %v1908, %v2108
        %v2110 = vpop.f32.mrb[0].mxu0
        %2111 = vdwg.mxu0
        %2112 = vmatprep.subr.mxu0 0.0
        %v2113 = vand.u32 %v311, 4294901760
        %v2114 = vsub.f32 %v311, %v2113
        %2115 = vmatpush1.msra.mxu0 %v2114
        %2116 = vmatprep.subr.mxu0 0.0
        %v2117 = vand.u32 %v312, 4294901760
        %v2118 = vsub.f32 %v312, %v2117
        %2119 = vmatpush1.msra.mxu0 %v2118
        %2120 = vmatprep.subr.mxu0 0.0
        %v2121 = vand.u32 %v313, 4294901760
        %v2122 = vsub.f32 %v313, %v2121
        %2123 = vmatpush1.msra.mxu0 %v2122
        %2124 = vmatprep.subr.mxu0 0.0
        %v2125 = vand.u32 %v314, 4294901760
        %v2126 = vsub.f32 %v314, %v2125
        %2127 = vmatpush1.msra.mxu0 %v2126
        %2128 = vmatprep.subr.mxu0 0.0
        %v2129 = vand.u32 %v315, 4294901760
        %v2130 = vsub.f32 %v315, %v2129
        %2131 = vmatpush1.msra.mxu0 %v2130
        %2132 = vmatprep.subr.mxu0 0.0
        %v2133 = vand.u32 %v316, 4294901760
        %v2134 = vsub.f32 %v316, %v2133
        %2135 = vmatpush1.msra.mxu0 %v2134
        %2136 = vmatprep.subr.mxu0 0.0
        %v2137 = vand.u32 %v317, 4294901760
        %v2138 = vsub.f32 %v317, %v2137
        %2139 = vmatpush1.msra.mxu0 %v2138
        %2140 = vmatprep.subr.mxu0 0.0
        %v2141 = vand.u32 %v318, 4294901760
        %v2142 = vsub.f32 %v318, %v2141
        %2143 = vmatpush1.msra.mxu0 %v2142
        %2144 = vmatprep.subr.mxu0 0.0
        %2145 = vmatpush1.msra.mxu0 0.0
        %2146 = vmatprep.subr.mxu0 0.0
        %2147 = vmatpush1.msra.mxu0 0.0
        %2148 = vmatprep.subr.mxu0 0.0
        %2149 = vmatpush1.msra.mxu0 0.0
        %2150 = vmatprep.subr.mxu0 0.0
        %2151 = vmatpush1.msra.mxu0 0.0
        %2152 = vmatprep.subr.mxu0 0.0
        %2153 = vmatpush1.msra.mxu0 0.0
        %2154 = vmatprep.subr.mxu0 0.0
        %2155 = vmatpush1.msra.mxu0 0.0
        %2156 = vmatprep.subr.mxu0 0.0
        %2157 = vmatpush1.msra.mxu0 0.0
        %2158 = vmatprep.subr.mxu0 0.0
        %2159 = vmatpush1.msra.mxu0 0.0
        %2160 = vmatprep.subr.mxu0 0.0
        %2161 = vmatpush1.msra.mxu0 0.0
        %2162 = vmatprep.subr.mxu0 0.0
        %2163 = vmatpush1.msra.mxu0 0.0
        %2164 = vmatprep.subr.mxu0 0.0
        %2165 = vmatpush1.msra.mxu0 0.0
        %2166 = vmatprep.subr.mxu0 0.0
        %2167 = vmatpush1.msra.mxu0 0.0
        %2168 = vmatprep.subr.mxu0 0.0
        %2169 = vmatpush1.msra.mxu0 0.0
        %2170 = vmatprep.subr.mxu0 0.0
        %2171 = vmatpush1.msra.mxu0 0.0
        %2172 = vmatprep.subr.mxu0 0.0
        %2173 = vmatpush1.msra.mxu0 0.0
        %2174 = vmatprep.subr.mxu0 0.0
        %2175 = vmatpush1.msra.mxu0 0.0
        %2176 = vmatprep.subr.mxu0 0.0
        %2177 = vmatpush1.msra.mxu0 0.0
        %2178 = vmatprep.subr.mxu0 0.0
        %2179 = vmatpush1.msra.mxu0 0.0
        %2180 = vmatprep.subr.mxu0 0.0
        %2181 = vmatpush1.msra.mxu0 0.0
        %2182 = vmatprep.subr.mxu0 0.0
        %2183 = vmatpush1.msra.mxu0 0.0
        %2184 = vmatprep.subr.mxu0 0.0
        %2185 = vmatpush1.msra.mxu0 0.0
        %2186 = vmatprep.subr.mxu0 0.0
        %2187 = vmatpush1.msra.mxu0 0.0
        %2188 = vmatprep.subr.mxu0 0.0
        %2189 = vmatpush1.msra.mxu0 0.0
        %2190 = vmatprep.subr.mxu0 0.0
        %2191 = vmatpush1.msra.mxu0 0.0
        %2192 = vmatprep.mubr.f32.mxu0 0.0
        %v2193 = vand.u32 %v1631, 4294901760
        %v2194 = vsub.f32 %v1631, %v2193
        %2195 = vmatmul.mubr.f32.gmra.mrb[0].mxu0 %v2194
        %v2196 = vpop.f32.mrb[0].mxu0
        %v2197 = vadd.f32 %v2019, %v2196
        %v2198 = vpop.f32.mrb[0].mxu0
        %2199 = vmatprep.mubr.f32.mxu0 0.0
        %v2200 = vand.u32 %v1634, 4294901760
        %v2201 = vsub.f32 %v1634, %v2200
        %2202 = vmatmul.mubr.f32.gmra.mrb[0].mxu0 %v2201
        %v2203 = vpop.f32.mrb[0].mxu0
        %v2204 = vadd.f32 %v2025, %v2203
        %v2205 = vpop.f32.mrb[0].mxu0
        %2206 = vmatprep.mubr.f32.mxu0 0.0
        %v2207 = vand.u32 %v1637, 4294901760
        %v2208 = vsub.f32 %v1637, %v2207
        %2209 = vmatmul.mubr.f32.gmra.mrb[0].mxu0 %v2208
        %v2210 = vpop.f32.mrb[0].mxu0
        %v2211 = vadd.f32 %v2031, %v2210
        %v2212 = vpop.f32.mrb[0].mxu0
        %2213 = vmatprep.mubr.f32.mxu0 0.0
        %v2214 = vand.u32 %v1640, 4294901760
        %v2215 = vsub.f32 %v1640, %v2214
        %2216 = vmatmul.mubr.f32.gmra.mrb[0].mxu0 %v2215
        %v2217 = vpop.f32.mrb[0].mxu0
        %v2218 = vadd.f32 %v2037, %v2217
        %v2219 = vpop.f32.mrb[0].mxu0
        %2220 = vmatprep.mubr.f32.mxu0 0.0
        %v2221 = vand.u32 %v1643, 4294901760
        %v2222 = vsub.f32 %v1643, %v2221
        %2223 = vmatmul.mubr.f32.gmra.mrb[0].mxu0 %v2222
        %v2224 = vpop.f32.mrb[0].mxu0
        %v2225 = vadd.f32 %v2043, %v2224
        %v2226 = vpop.f32.mrb[0].mxu0
        %2227 = vmatprep.mubr.f32.mxu0 0.0
        %v2228 = vand.u32 %v1646, 4294901760
        %v2229 = vsub.f32 %v1646, %v2228
        %2230 = vmatmul.mubr.f32.gmra.mrb[0].mxu0 %v2229
        %v2231 = vpop.f32.mrb[0].mxu0
        %v2232 = vadd.f32 %v2049, %v2231
        %v2233 = vpop.f32.mrb[0].mxu0
        %2234 = vmatprep.mubr.f32.mxu0 0.0
        %v2235 = vand.u32 %v1649, 4294901760
        %v2236 = vsub.f32 %v1649, %v2235
        %2237 = vmatmul.mubr.f32.gmra.mrb[0].mxu0 %v2236
        %v2238 = vpop.f32.mrb[0].mxu0
        %v2239 = vadd.f32 %v2055, %v2238
        %v2240 = vpop.f32.mrb[0].mxu0
        %2241 = vmatprep.mubr.f32.mxu0 0.0
        %v2242 = vand.u32 %v1652, 4294901760
        %v2243 = vsub.f32 %v1652, %v2242
        %2244 = vmatmul.mubr.f32.gmra.mrb[0].mxu0 %v2243
        %v2245 = vpop.f32.mrb[0].mxu0
        %v2246 = vadd.f32 %v2061, %v2245
        %v2247 = vpop.f32.mrb[0].mxu0
        %2248 = vmatprep.mubr.f32.mxu0 0.0
        %v2249 = vand.u32 %v1655, 4294901760
        %v2250 = vsub.f32 %v1655, %v2249
        %2251 = vmatmul.mubr.f32.gmra.mrb[0].mxu0 %v2250
        %v2252 = vpop.f32.mrb[0].mxu0
        %v2253 = vadd.f32 %v2067, %v2252
        %v2254 = vpop.f32.mrb[0].mxu0
        %2255 = vmatprep.mubr.f32.mxu0 0.0
        %v2256 = vand.u32 %v1658, 4294901760
        %v2257 = vsub.f32 %v1658, %v2256
        %2258 = vmatmul.mubr.f32.gmra.mrb[0].mxu0 %v2257
        %v2259 = vpop.f32.mrb[0].mxu0
        %v2260 = vadd.f32 %v2073, %v2259
        %v2261 = vpop.f32.mrb[0].mxu0
        %2262 = vmatprep.mubr.f32.mxu0 0.0
        %v2263 = vand.u32 %v1661, 4294901760
        %v2264 = vsub.f32 %v1661, %v2263
        %2265 = vmatmul.mubr.f32.gmra.mrb[0].mxu0 %v2264
        %v2266 = vpop.f32.mrb[0].mxu0
        %v2267 = vadd.f32 %v2079, %v2266
        %v2268 = vpop.f32.mrb[0].mxu0
        %2269 = vmatprep.mubr.f32.mxu0 0.0
        %v2270 = vand.u32 %v1664, 4294901760
        %v2271 = vsub.f32 %v1664, %v2270
        %2272 = vmatmul.mubr.f32.gmra.mrb[0].mxu0 %v2271
        %v2273 = vpop.f32.mrb[0].mxu0
        %v2274 = vadd.f32 %v2085, %v2273
        %v2275 = vpop.f32.mrb[0].mxu0
        %2276 = vmatprep.mubr.f32.mxu0 0.0
        %v2277 = vand.u32 %v1667, 4294901760
        %v2278 = vsub.f32 %v1667, %v2277
        %2279 = vmatmul.mubr.f32.gmra.mrb[0].mxu0 %v2278
        %v2280 = vpop.f32.mrb[0].mxu0
        %v2281 = vadd.f32 %v2091, %v2280
        %v2282 = vpop.f32.mrb[0].mxu0
        %2283 = vmatprep.mubr.f32.mxu0 0.0
        %v2284 = vand.u32 %v1670, 4294901760
        %v2285 = vsub.f32 %v1670, %v2284
        %2286 = vmatmul.mubr.f32.gmra.mrb[0].mxu0 %v2285
        %v2287 = vpop.f32.mrb[0].mxu0
        %v2288 = vadd.f32 %v2097, %v2287
        %v2289 = vpop.f32.mrb[0].mxu0
        %2290 = vmatprep.mubr.f32.mxu0 0.0
        %v2291 = vand.u32 %v1673, 4294901760
        %v2292 = vsub.f32 %v1673, %v2291
        %2293 = vmatmul.mubr.f32.gmra.mrb[0].mxu0 %v2292
        %v2294 = vpop.f32.mrb[0].mxu0
        %v2295 = vadd.f32 %v2103, %v2294
        %v2296 = vpop.f32.mrb[0].mxu0
        %2297 = vmatprep.mubr.f32.mxu0 0.0
        %v2298 = vand.u32 %v1676, 4294901760
        %v2299 = vsub.f32 %v1676, %v2298
        %2300 = vmatmul.mubr.f32.gmra.mrb[0].mxu0 %v2299
        %v2301 = vpop.f32.mrb[0].mxu0
        %v2302 = vadd.f32 %v2109, %v2301
        %v2303 = vpop.f32.mrb[0].mxu0
        %2304 = vdwg.mxu0
        %2305 = vmatprep.subr.mxu0 0.0
        %v2306 = vand.u32 %v311, 4294901760
        %2307 = vmatpush1.msra.mxu0 %v2306
        %2308 = vmatprep.subr.mxu0 0.0
        %v2309 = vand.u32 %v312, 4294901760
        %2310 = vmatpush1.msra.mxu0 %v2309
        %2311 = vmatprep.subr.mxu0 0.0
        %v2312 = vand.u32 %v313, 4294901760
        %2313 = vmatpush1.msra.mxu0 %v2312
        %2314 = vmatprep.subr.mxu0 0.0
        %v2315 = vand.u32 %v314, 4294901760
        %2316 = vmatpush1.msra.mxu0 %v2315
        %2317 = vmatprep.subr.mxu0 0.0
        %v2318 = vand.u32 %v315, 4294901760
        %2319 = vmatpush1.msra.mxu0 %v2318
        %2320 = vmatprep.subr.mxu0 0.0
        %v2321 = vand.u32 %v316, 4294901760
        %2322 = vmatpush1.msra.mxu0 %v2321
        %2323 = vmatprep.subr.mxu0 0.0
        %v2324 = vand.u32 %v317, 4294901760
        %2325 = vmatpush1.msra.mxu0 %v2324
        %2326 = vmatprep.subr.mxu0 0.0
        %v2327 = vand.u32 %v318, 4294901760
        %2328 = vmatpush1.msra.mxu0 %v2327
        %2329 = vmatprep.subr.mxu0 0.0
        %2330 = vmatpush1.msra.mxu0 0.0
        %2331 = vmatprep.subr.mxu0 0.0
        %2332 = vmatpush1.msra.mxu0 0.0
        %2333 = vmatprep.subr.mxu0 0.0
        %2334 = vmatpush1.msra.mxu0 0.0
        %2335 = vmatprep.subr.mxu0 0.0
        %2336 = vmatpush1.msra.mxu0 0.0
        %2337 = vmatprep.subr.mxu0 0.0
        %2338 = vmatpush1.msra.mxu0 0.0
        %2339 = vmatprep.subr.mxu0 0.0
        %2340 = vmatpush1.msra.mxu0 0.0
        %2341 = vmatprep.subr.mxu0 0.0
        %2342 = vmatpush1.msra.mxu0 0.0
        %2343 = vmatprep.subr.mxu0 0.0
        %2344 = vmatpush1.msra.mxu0 0.0
        %2345 = vmatprep.subr.mxu0 0.0
        %2346 = vmatpush1.msra.mxu0 0.0
        %2347 = vmatprep.subr.mxu0 0.0
        %2348 = vmatpush1.msra.mxu0 0.0
        %2349 = vmatprep.subr.mxu0 0.0
        %2350 = vmatpush1.msra.mxu0 0.0
        %2351 = vmatprep.subr.mxu0 0.0
        %2352 = vmatpush1.msra.mxu0 0.0
        %2353 = vmatprep.subr.mxu0 0.0
        %2354 = vmatpush1.msra.mxu0 0.0
        %2355 = vmatprep.subr.mxu0 0.0
        %2356 = vmatpush1.msra.mxu0 0.0
        %2357 = vmatprep.subr.mxu0 0.0
        %2358 = vmatpush1.msra.mxu0 0.0
        %2359 = vmatprep.subr.mxu0 0.0
        %2360 = vmatpush1.msra.mxu0 0.0
        %2361 = vmatprep.subr.mxu0 0.0
        %2362 = vmatpush1.msra.mxu0 0.0
        %2363 = vmatprep.subr.mxu0 0.0
        %2364 = vmatpush1.msra.mxu0 0.0
        %2365 = vmatprep.subr.mxu0 0.0
        %2366 = vmatpush1.msra.mxu0 0.0
        %2367 = vmatprep.subr.mxu0 0.0
        %2368 = vmatpush1.msra.mxu0 0.0
        %2369 = vmatprep.subr.mxu0 0.0
        %2370 = vmatpush1.msra.mxu0 0.0
        %2371 = vmatprep.subr.mxu0 0.0
        %2372 = vmatpush1.msra.mxu0 0.0
        %2373 = vmatprep.subr.mxu0 0.0
        %2374 = vmatpush1.msra.mxu0 0.0
        %2375 = vmatprep.subr.mxu0 0.0
        %2376 = vmatpush1.msra.mxu0 0.0
        %2377 = vmatprep.mubr.f32.mxu0 0.0
        %v2378 = vand.u32 %v1631, 4294901760
        %v2379 = vsub.f32 %v1631, %v2378
        %v2380 = vand.u32 %v2379, 4294901760
        %2381 = vmatmul.mubr.f32.gmra.mrb[0].mxu0 %v2380
        %v2382 = vpop.f32.mrb[0].mxu0
        %v2383 = vadd.f32 %v2197, %v2382
        %v2384 = vpop.f32.mrb[0].mxu0
        %2385 = vmatprep.mubr.f32.mxu0 0.0
        %v2386 = vand.u32 %v1634, 4294901760
        %v2387 = vsub.f32 %v1634, %v2386
        %v2388 = vand.u32 %v2387, 4294901760
        %2389 = vmatmul.mubr.f32.gmra.mrb[0].mxu0 %v2388
        %v2390 = vpop.f32.mrb[0].mxu0
        %v2391 = vadd.f32 %v2204, %v2390
        %v2392 = vpop.f32.mrb[0].mxu0
        %2393 = vmatprep.mubr.f32.mxu0 0.0
        %v2394 = vand.u32 %v1637, 4294901760
        %v2395 = vsub.f32 %v1637, %v2394
        %v2396 = vand.u32 %v2395, 4294901760
        %2397 = vmatmul.mubr.f32.gmra.mrb[0].mxu0 %v2396
        %v2398 = vpop.f32.mrb[0].mxu0
        %v2399 = vadd.f32 %v2211, %v2398
        %v2400 = vpop.f32.mrb[0].mxu0
        %2401 = vmatprep.mubr.f32.mxu0 0.0
        %v2402 = vand.u32 %v1640, 4294901760
        %v2403 = vsub.f32 %v1640, %v2402
        %v2404 = vand.u32 %v2403, 4294901760
        %2405 = vmatmul.mubr.f32.gmra.mrb[0].mxu0 %v2404
        %v2406 = vpop.f32.mrb[0].mxu0
        %v2407 = vadd.f32 %v2218, %v2406
        %v2408 = vpop.f32.mrb[0].mxu0
        %2409 = vmatprep.mubr.f32.mxu0 0.0
        %v2410 = vand.u32 %v1643, 4294901760
        %v2411 = vsub.f32 %v1643, %v2410
        %v2412 = vand.u32 %v2411, 4294901760
        %2413 = vmatmul.mubr.f32.gmra.mrb[0].mxu0 %v2412
        %v2414 = vpop.f32.mrb[0].mxu0
        %v2415 = vadd.f32 %v2225, %v2414
        %v2416 = vpop.f32.mrb[0].mxu0
        %2417 = vmatprep.mubr.f32.mxu0 0.0
        %v2418 = vand.u32 %v1646, 4294901760
        %v2419 = vsub.f32 %v1646, %v2418
        %v2420 = vand.u32 %v2419, 4294901760
        %2421 = vmatmul.mubr.f32.gmra.mrb[0].mxu0 %v2420
        %v2422 = vpop.f32.mrb[0].mxu0
        %v2423 = vadd.f32 %v2232, %v2422
        %v2424 = vpop.f32.mrb[0].mxu0
        %2425 = vmatprep.mubr.f32.mxu0 0.0
        %v2426 = vand.u32 %v1649, 4294901760
        %v2427 = vsub.f32 %v1649, %v2426
        %v2428 = vand.u32 %v2427, 4294901760
        %2429 = vmatmul.mubr.f32.gmra.mrb[0].mxu0 %v2428
        %v2430 = vpop.f32.mrb[0].mxu0
        %v2431 = vadd.f32 %v2239, %v2430
        %v2432 = vpop.f32.mrb[0].mxu0
        %2433 = vmatprep.mubr.f32.mxu0 0.0
        %v2434 = vand.u32 %v1652, 4294901760
        %v2435 = vsub.f32 %v1652, %v2434
        %v2436 = vand.u32 %v2435, 4294901760
        %2437 = vmatmul.mubr.f32.gmra.mrb[0].mxu0 %v2436
        %v2438 = vpop.f32.mrb[0].mxu0
        %v2439 = vadd.f32 %v2246, %v2438
        %v2440 = vpop.f32.mrb[0].mxu0
        %2441 = vmatprep.mubr.f32.mxu0 0.0
        %v2442 = vand.u32 %v1655, 4294901760
        %v2443 = vsub.f32 %v1655, %v2442
        %v2444 = vand.u32 %v2443, 4294901760
        %2445 = vmatmul.mubr.f32.gmra.mrb[0].mxu0 %v2444
        %v2446 = vpop.f32.mrb[0].mxu0
        %v2447 = vadd.f32 %v2253, %v2446
        %v2448 = vpop.f32.mrb[0].mxu0
        %2449 = vmatprep.mubr.f32.mxu0 0.0
        %v2450 = vand.u32 %v1658, 4294901760
        %v2451 = vsub.f32 %v1658, %v2450
        %v2452 = vand.u32 %v2451, 4294901760
        %2453 = vmatmul.mubr.f32.gmra.mrb[0].mxu0 %v2452
        %v2454 = vpop.f32.mrb[0].mxu0
        %v2455 = vadd.f32 %v2260, %v2454
        %v2456 = vpop.f32.mrb[0].mxu0
        %2457 = vmatprep.mubr.f32.mxu0 0.0
        %v2458 = vand.u32 %v1661, 4294901760
        %v2459 = vsub.f32 %v1661, %v2458
        %v2460 = vand.u32 %v2459, 4294901760
        %2461 = vmatmul.mubr.f32.gmra.mrb[0].mxu0 %v2460
        %v2462 = vpop.f32.mrb[0].mxu0
        %v2463 = vadd.f32 %v2267, %v2462
        %v2464 = vpop.f32.mrb[0].mxu0
        %2465 = vmatprep.mubr.f32.mxu0 0.0
        %v2466 = vand.u32 %v1664, 4294901760
        %v2467 = vsub.f32 %v1664, %v2466
        %v2468 = vand.u32 %v2467, 4294901760
        %2469 = vmatmul.mubr.f32.gmra.mrb[0].mxu0 %v2468
        %v2470 = vpop.f32.mrb[0].mxu0
        %v2471 = vadd.f32 %v2274, %v2470
        %v2472 = vpop.f32.mrb[0].mxu0
        %2473 = vmatprep.mubr.f32.mxu0 0.0
        %v2474 = vand.u32 %v1667, 4294901760
        %v2475 = vsub.f32 %v1667, %v2474
        %v2476 = vand.u32 %v2475, 4294901760
        %2477 = vmatmul.mubr.f32.gmra.mrb[0].mxu0 %v2476
        %v2478 = vpop.f32.mrb[0].mxu0
        %v2479 = vadd.f32 %v2281, %v2478
        %v2480 = vpop.f32.mrb[0].mxu0
        %2481 = vmatprep.mubr.f32.mxu0 0.0
        %v2482 = vand.u32 %v1670, 4294901760
        %v2483 = vsub.f32 %v1670, %v2482
        %v2484 = vand.u32 %v2483, 4294901760
        %2485 = vmatmul.mubr.f32.gmra.mrb[0].mxu0 %v2484
        %v2486 = vpop.f32.mrb[0].mxu0
        %v2487 = vadd.f32 %v2288, %v2486
        %v2488 = vpop.f32.mrb[0].mxu0
        %2489 = vmatprep.mubr.f32.mxu0 0.0
        %v2490 = vand.u32 %v1673, 4294901760
        %v2491 = vsub.f32 %v1673, %v2490
        %v2492 = vand.u32 %v2491, 4294901760
        %2493 = vmatmul.mubr.f32.gmra.mrb[0].mxu0 %v2492
        %v2494 = vpop.f32.mrb[0].mxu0
        %v2495 = vadd.f32 %v2295, %v2494
        %v2496 = vpop.f32.mrb[0].mxu0
        %2497 = vmatprep.mubr.f32.mxu0 0.0
        %v2498 = vand.u32 %v1676, 4294901760
        %v2499 = vsub.f32 %v1676, %v2498
        %v2500 = vand.u32 %v2499, 4294901760
        %2501 = vmatmul.mubr.f32.gmra.mrb[0].mxu0 %v2500
        %v2502 = vpop.f32.mrb[0].mxu0
        %v2503 = vadd.f32 %v2302, %v2502
        %v2504 = vpop.f32.mrb[0].mxu0
        %2505 = vdwg.mxu0
        %2506 = vmatprep.subr.mxu0 0.0
        %v2507 = vand.u32 %v311, 4294901760
        %v2508 = vsub.f32 %v311, %v2507
        %v2509 = vand.u32 %v2508, 4294901760
        %2510 = vmatpush1.msra.mxu0 %v2509
        %2511 = vmatprep.subr.mxu0 0.0
        %v2512 = vand.u32 %v312, 4294901760
        %v2513 = vsub.f32 %v312, %v2512
        %v2514 = vand.u32 %v2513, 4294901760
        %2515 = vmatpush1.msra.mxu0 %v2514
        %2516 = vmatprep.subr.mxu0 0.0
        %v2517 = vand.u32 %v313, 4294901760
        %v2518 = vsub.f32 %v313, %v2517
        %v2519 = vand.u32 %v2518, 4294901760
        %2520 = vmatpush1.msra.mxu0 %v2519
        %2521 = vmatprep.subr.mxu0 0.0
        %v2522 = vand.u32 %v314, 4294901760
        %v2523 = vsub.f32 %v314, %v2522
        %v2524 = vand.u32 %v2523, 4294901760
        %2525 = vmatpush1.msra.mxu0 %v2524
        %2526 = vmatprep.subr.mxu0 0.0
        %v2527 = vand.u32 %v315, 4294901760
        %v2528 = vsub.f32 %v315, %v2527
        %v2529 = vand.u32 %v2528, 4294901760
        %2530 = vmatpush1.msra.mxu0 %v2529
        %2531 = vmatprep.subr.mxu0 0.0
        %v2532 = vand.u32 %v316, 4294901760
        %v2533 = vsub.f32 %v316, %v2532
        %v2534 = vand.u32 %v2533, 4294901760
        %2535 = vmatpush1.msra.mxu0 %v2534
        %2536 = vmatprep.subr.mxu0 0.0
        %v2537 = vand.u32 %v317, 4294901760
        %v2538 = vsub.f32 %v317, %v2537
        %v2539 = vand.u32 %v2538, 4294901760
        %2540 = vmatpush1.msra.mxu0 %v2539
        %2541 = vmatprep.subr.mxu0 0.0
        %v2542 = vand.u32 %v318, 4294901760
        %v2543 = vsub.f32 %v318, %v2542
        %v2544 = vand.u32 %v2543, 4294901760
        %2545 = vmatpush1.msra.mxu0 %v2544
        %2546 = vmatprep.subr.mxu0 0.0
        %2547 = vmatpush1.msra.mxu0 0.0
        %2548 = vmatprep.subr.mxu0 0.0
        %2549 = vmatpush1.msra.mxu0 0.0
        %2550 = vmatprep.subr.mxu0 0.0
        %2551 = vmatpush1.msra.mxu0 0.0
        %2552 = vmatprep.subr.mxu0 0.0
        %2553 = vmatpush1.msra.mxu0 0.0
        %2554 = vmatprep.subr.mxu0 0.0
        %2555 = vmatpush1.msra.mxu0 0.0
        %2556 = vmatprep.subr.mxu0 0.0
        %2557 = vmatpush1.msra.mxu0 0.0
        %2558 = vmatprep.subr.mxu0 0.0
        %2559 = vmatpush1.msra.mxu0 0.0
        %2560 = vmatprep.subr.mxu0 0.0
        %2561 = vmatpush1.msra.mxu0 0.0
        %2562 = vmatprep.subr.mxu0 0.0
        %2563 = vmatpush1.msra.mxu0 0.0
        %2564 = vmatprep.subr.mxu0 0.0
        %2565 = vmatpush1.msra.mxu0 0.0
        %2566 = vmatprep.subr.mxu0 0.0
        %2567 = vmatpush1.msra.mxu0 0.0
        %2568 = vmatprep.subr.mxu0 0.0
        %2569 = vmatpush1.msra.mxu0 0.0
        %2570 = vmatprep.subr.mxu0 0.0
        %2571 = vmatpush1.msra.mxu0 0.0
        %2572 = vmatprep.subr.mxu0 0.0
        %2573 = vmatpush1.msra.mxu0 0.0
        %2574 = vmatprep.subr.mxu0 0.0
        %2575 = vmatpush1.msra.mxu0 0.0
        %2576 = vmatprep.subr.mxu0 0.0
        %2577 = vmatpush1.msra.mxu0 0.0
        %2578 = vmatprep.subr.mxu0 0.0
        %2579 = vmatpush1.msra.mxu0 0.0
        %2580 = vmatprep.subr.mxu0 0.0
        %2581 = vmatpush1.msra.mxu0 0.0
        %2582 = vmatprep.subr.mxu0 0.0
        %2583 = vmatpush1.msra.mxu0 0.0
        %2584 = vmatprep.subr.mxu0 0.0
        %2585 = vmatpush1.msra.mxu0 0.0
        %2586 = vmatprep.subr.mxu0 0.0
        %2587 = vmatpush1.msra.mxu0 0.0
        %2588 = vmatprep.subr.mxu0 0.0
        %2589 = vmatpush1.msra.mxu0 0.0
        %2590 = vmatprep.subr.mxu0 0.0
        %2591 = vmatpush1.msra.mxu0 0.0
        %2592 = vmatprep.subr.mxu0 0.0
        %2593 = vmatpush1.msra.mxu0 0.0
        %2594 = vmatprep.mubr.f32.mxu0 0.0
        %v2595 = vand.u32 %v1631, 4294901760
        %2596 = vmatmul.mubr.f32.gmra.mrb[0].mxu0 %v2595
        %v2597 = vpop.f32.mrb[0].mxu0
        %v2598 = vadd.f32 %v2383, %v2597
        %v2599 = vpop.f32.mrb[0].mxu0
        %2600 = vmatprep.mubr.f32.mxu0 0.0
        %v2601 = vand.u32 %v1634, 4294901760
        %2602 = vmatmul.mubr.f32.gmra.mrb[0].mxu0 %v2601
        %v2603 = vpop.f32.mrb[0].mxu0
        %v2604 = vadd.f32 %v2391, %v2603
        %v2605 = vpop.f32.mrb[0].mxu0
        %2606 = vmatprep.mubr.f32.mxu0 0.0
        %v2607 = vand.u32 %v1637, 4294901760
        %2608 = vmatmul.mubr.f32.gmra.mrb[0].mxu0 %v2607
        %v2609 = vpop.f32.mrb[0].mxu0
        %v2610 = vadd.f32 %v2399, %v2609
        %v2611 = vpop.f32.mrb[0].mxu0
        %2612 = vmatprep.mubr.f32.mxu0 0.0
        %v2613 = vand.u32 %v1640, 4294901760
        %2614 = vmatmul.mubr.f32.gmra.mrb[0].mxu0 %v2613
        %v2615 = vpop.f32.mrb[0].mxu0
        %v2616 = vadd.f32 %v2407, %v2615
        %v2617 = vpop.f32.mrb[0].mxu0
        %2618 = vmatprep.mubr.f32.mxu0 0.0
        %v2619 = vand.u32 %v1643, 4294901760
        %2620 = vmatmul.mubr.f32.gmra.mrb[0].mxu0 %v2619
        %v2621 = vpop.f32.mrb[0].mxu0
        %v2622 = vadd.f32 %v2415, %v2621
        %v2623 = vpop.f32.mrb[0].mxu0
        %2624 = vmatprep.mubr.f32.mxu0 0.0
        %v2625 = vand.u32 %v1646, 4294901760
        %2626 = vmatmul.mubr.f32.gmra.mrb[0].mxu0 %v2625
        %v2627 = vpop.f32.mrb[0].mxu0
        %v2628 = vadd.f32 %v2423, %v2627
        %v2629 = vpop.f32.mrb[0].mxu0
        %2630 = vmatprep.mubr.f32.mxu0 0.0
        %v2631 = vand.u32 %v1649, 4294901760
        %2632 = vmatmul.mubr.f32.gmra.mrb[0].mxu0 %v2631
        %v2633 = vpop.f32.mrb[0].mxu0
        %v2634 = vadd.f32 %v2431, %v2633
        %v2635 = vpop.f32.mrb[0].mxu0
        %2636 = vmatprep.mubr.f32.mxu0 0.0
        %v2637 = vand.u32 %v1652, 4294901760
        %2638 = vmatmul.mubr.f32.gmra.mrb[0].mxu0 %v2637
        %v2639 = vpop.f32.mrb[0].mxu0
        %v2640 = vadd.f32 %v2439, %v2639
        %v2641 = vpop.f32.mrb[0].mxu0
        %2642 = vmatprep.mubr.f32.mxu0 0.0
        %v2643 = vand.u32 %v1655, 4294901760
        %2644 = vmatmul.mubr.f32.gmra.mrb[0].mxu0 %v2643
        %v2645 = vpop.f32.mrb[0].mxu0
        %v2646 = vadd.f32 %v2447, %v2645
        %v2647 = vpop.f32.mrb[0].mxu0
        %2648 = vmatprep.mubr.f32.mxu0 0.0
        %v2649 = vand.u32 %v1658, 4294901760
        %2650 = vmatmul.mubr.f32.gmra.mrb[0].mxu0 %v2649
        %v2651 = vpop.f32.mrb[0].mxu0
        %v2652 = vadd.f32 %v2455, %v2651
        %v2653 = vpop.f32.mrb[0].mxu0
        %2654 = vmatprep.mubr.f32.mxu0 0.0
        %v2655 = vand.u32 %v1661, 4294901760
        %2656 = vmatmul.mubr.f32.gmra.mrb[0].mxu0 %v2655
        %v2657 = vpop.f32.mrb[0].mxu0
        %v2658 = vadd.f32 %v2463, %v2657
        %v2659 = vpop.f32.mrb[0].mxu0
        %2660 = vmatprep.mubr.f32.mxu0 0.0
        %v2661 = vand.u32 %v1664, 4294901760
        %2662 = vmatmul.mubr.f32.gmra.mrb[0].mxu0 %v2661
        %v2663 = vpop.f32.mrb[0].mxu0
        %v2664 = vadd.f32 %v2471, %v2663
        %v2665 = vpop.f32.mrb[0].mxu0
        %2666 = vmatprep.mubr.f32.mxu0 0.0
        %v2667 = vand.u32 %v1667, 4294901760
        %2668 = vmatmul.mubr.f32.gmra.mrb[0].mxu0 %v2667
        %v2669 = vpop.f32.mrb[0].mxu0
        %v2670 = vadd.f32 %v2479, %v2669
        %v2671 = vpop.f32.mrb[0].mxu0
        %2672 = vmatprep.mubr.f32.mxu0 0.0
        %v2673 = vand.u32 %v1670, 4294901760
        %2674 = vmatmul.mubr.f32.gmra.mrb[0].mxu0 %v2673
        %v2675 = vpop.f32.mrb[0].mxu0
        %v2676 = vadd.f32 %v2487, %v2675
        %v2677 = vpop.f32.mrb[0].mxu0
        %2678 = vmatprep.mubr.f32.mxu0 0.0
        %v2679 = vand.u32 %v1673, 4294901760
        %2680 = vmatmul.mubr.f32.gmra.mrb[0].mxu0 %v2679
        %v2681 = vpop.f32.mrb[0].mxu0
        %v2682 = vadd.f32 %v2495, %v2681
        %v2683 = vpop.f32.mrb[0].mxu0
        %2684 = vmatprep.mubr.f32.mxu0 0.0
        %v2685 = vand.u32 %v1676, 4294901760
        %2686 = vmatmul.mubr.f32.gmra.mrb[0].mxu0 %v2685
        %v2687 = vpop.f32.mrb[0].mxu0
        %v2688 = vadd.f32 %v2503, %v2687
        %v2689 = vpop.f32.mrb[0].mxu0
        %2690 = vdwg.mxu0
        %2691 = vmatprep.subr.mxu0 0.0
        %v2692 = vand.u32 %v311, 4294901760
        %2693 = vmatpush1.msra.mxu0 %v2692
        %2694 = vmatprep.subr.mxu0 0.0
        %v2695 = vand.u32 %v312, 4294901760
        %2696 = vmatpush1.msra.mxu0 %v2695
        %2697 = vmatprep.subr.mxu0 0.0
        %v2698 = vand.u32 %v313, 4294901760
        %2699 = vmatpush1.msra.mxu0 %v2698
        %2700 = vmatprep.subr.mxu0 0.0
        %v2701 = vand.u32 %v314, 4294901760
        %2702 = vmatpush1.msra.mxu0 %v2701
        %2703 = vmatprep.subr.mxu0 0.0
        %v2704 = vand.u32 %v315, 4294901760
        %2705 = vmatpush1.msra.mxu0 %v2704
        %2706 = vmatprep.subr.mxu0 0.0
        %v2707 = vand.u32 %v316, 4294901760
        %2708 = vmatpush1.msra.mxu0 %v2707
        %2709 = vmatprep.subr.mxu0 0.0
        %v2710 = vand.u32 %v317, 4294901760
        %2711 = vmatpush1.msra.mxu0 %v2710
        %2712 = vmatprep.subr.mxu0 0.0
        %v2713 = vand.u32 %v318, 4294901760
        %2714 = vmatpush1.msra.mxu0 %v2713
        %2715 = vmatprep.subr.mxu0 0.0
        %2716 = vmatpush1.msra.mxu0 0.0
        %2717 = vmatprep.subr.mxu0 0.0
        %2718 = vmatpush1.msra.mxu0 0.0
        %2719 = vmatprep.subr.mxu0 0.0
        %2720 = vmatpush1.msra.mxu0 0.0
        %2721 = vmatprep.subr.mxu0 0.0
        %2722 = vmatpush1.msra.mxu0 0.0
        %2723 = vmatprep.subr.mxu0 0.0
        %2724 = vmatpush1.msra.mxu0 0.0
        %2725 = vmatprep.subr.mxu0 0.0
        %2726 = vmatpush1.msra.mxu0 0.0
        %2727 = vmatprep.subr.mxu0 0.0
        %2728 = vmatpush1.msra.mxu0 0.0
        %2729 = vmatprep.subr.mxu0 0.0
        %2730 = vmatpush1.msra.mxu0 0.0
        %2731 = vmatprep.subr.mxu0 0.0
        %2732 = vmatpush1.msra.mxu0 0.0
        %2733 = vmatprep.subr.mxu0 0.0
        %2734 = vmatpush1.msra.mxu0 0.0
        %2735 = vmatprep.subr.mxu0 0.0
        %2736 = vmatpush1.msra.mxu0 0.0
        %2737 = vmatprep.subr.mxu0 0.0
        %2738 = vmatpush1.msra.mxu0 0.0
        %2739 = vmatprep.subr.mxu0 0.0
        %2740 = vmatpush1.msra.mxu0 0.0
        %2741 = vmatprep.subr.mxu0 0.0
        %2742 = vmatpush1.msra.mxu0 0.0
        %2743 = vmatprep.subr.mxu0 0.0
        %2744 = vmatpush1.msra.mxu0 0.0
        %2745 = vmatprep.subr.mxu0 0.0
        %2746 = vmatpush1.msra.mxu0 0.0
        %2747 = vmatprep.subr.mxu0 0.0
        %2748 = vmatpush1.msra.mxu0 0.0
        %2749 = vmatprep.subr.mxu0 0.0
        %2750 = vmatpush1.msra.mxu0 0.0
        %2751 = vmatprep.subr.mxu0 0.0
        %2752 = vmatpush1.msra.mxu0 0.0
        %2753 = vmatprep.subr.mxu0 0.0
        %2754 = vmatpush1.msra.mxu0 0.0
        %2755 = vmatprep.subr.mxu0 0.0
        %2756 = vmatpush1.msra.mxu0 0.0
        %2757 = vmatprep.subr.mxu0 0.0
        %2758 = vmatpush1.msra.mxu0 0.0
        %2759 = vmatprep.subr.mxu0 0.0
        %2760 = vmatpush1.msra.mxu0 0.0
        %2761 = vmatprep.subr.mxu0 0.0
        %2762 = vmatpush1.msra.mxu0 0.0
        %2763 = vmatprep.mubr.f32.mxu0 0.0
        %v2764 = vand.u32 %v1631, 4294901760
        %2765 = vmatmul.mubr.f32.gmra.mrb[0].mxu0 %v2764
        %v2766 = vpop.f32.mrb[0].mxu0
        %v2767 = vadd.f32 %v2598, %v2766
        %v2768 = vpop.f32.mrb[0].mxu0
        %2769 = vmatprep.mubr.f32.mxu0 0.0
        %v2770 = vand.u32 %v1634, 4294901760
        %2771 = vmatmul.mubr.f32.gmra.mrb[0].mxu0 %v2770
        %v2772 = vpop.f32.mrb[0].mxu0
        %v2773 = vadd.f32 %v2604, %v2772
        %v2774 = vpop.f32.mrb[0].mxu0
        %2775 = vmatprep.mubr.f32.mxu0 0.0
        %v2776 = vand.u32 %v1637, 4294901760
        %2777 = vmatmul.mubr.f32.gmra.mrb[0].mxu0 %v2776
        %v2778 = vpop.f32.mrb[0].mxu0
        %v2779 = vadd.f32 %v2610, %v2778
        %v2780 = vpop.f32.mrb[0].mxu0
        %2781 = vmatprep.mubr.f32.mxu0 0.0
        %v2782 = vand.u32 %v1640, 4294901760
        %2783 = vmatmul.mubr.f32.gmra.mrb[0].mxu0 %v2782
        %v2784 = vpop.f32.mrb[0].mxu0
        %v2785 = vadd.f32 %v2616, %v2784
        %v2786 = vpop.f32.mrb[0].mxu0
        %2787 = vmatprep.mubr.f32.mxu0 0.0
        %v2788 = vand.u32 %v1643, 4294901760
        %2789 = vmatmul.mubr.f32.gmra.mrb[0].mxu0 %v2788
        %v2790 = vpop.f32.mrb[0].mxu0
        %v2791 = vadd.f32 %v2622, %v2790
        %v2792 = vpop.f32.mrb[0].mxu0
        %2793 = vmatprep.mubr.f32.mxu0 0.0
        %v2794 = vand.u32 %v1646, 4294901760
        %2795 = vmatmul.mubr.f32.gmra.mrb[0].mxu0 %v2794
        %v2796 = vpop.f32.mrb[0].mxu0
        %v2797 = vadd.f32 %v2628, %v2796
        %v2798 = vpop.f32.mrb[0].mxu0
        %2799 = vmatprep.mubr.f32.mxu0 0.0
        %v2800 = vand.u32 %v1649, 4294901760
        %2801 = vmatmul.mubr.f32.gmra.mrb[0].mxu0 %v2800
        %v2802 = vpop.f32.mrb[0].mxu0
        %v2803 = vadd.f32 %v2634, %v2802
        %v2804 = vpop.f32.mrb[0].mxu0
        %2805 = vmatprep.mubr.f32.mxu0 0.0
        %v2806 = vand.u32 %v1652, 4294901760
        %2807 = vmatmul.mubr.f32.gmra.mrb[0].mxu0 %v2806
        %v2808 = vpop.f32.mrb[0].mxu0
        %v2809 = vadd.f32 %v2640, %v2808
        %v2810 = vpop.f32.mrb[0].mxu0
        %2811 = vmatprep.mubr.f32.mxu0 0.0
        %v2812 = vand.u32 %v1655, 4294901760
        %2813 = vmatmul.mubr.f32.gmra.mrb[0].mxu0 %v2812
        %v2814 = vpop.f32.mrb[0].mxu0
        %v2815 = vadd.f32 %v2646, %v2814
        %v2816 = vpop.f32.mrb[0].mxu0
        %2817 = vmatprep.mubr.f32.mxu0 0.0
        %v2818 = vand.u32 %v1658, 4294901760
        %2819 = vmatmul.mubr.f32.gmra.mrb[0].mxu0 %v2818
        %v2820 = vpop.f32.mrb[0].mxu0
        %v2821 = vadd.f32 %v2652, %v2820
        %v2822 = vpop.f32.mrb[0].mxu0
        %2823 = vmatprep.mubr.f32.mxu0 0.0
        %v2824 = vand.u32 %v1661, 4294901760
        %2825 = vmatmul.mubr.f32.gmra.mrb[0].mxu0 %v2824
        %v2826 = vpop.f32.mrb[0].mxu0
        %v2827 = vadd.f32 %v2658, %v2826
        %v2828 = vpop.f32.mrb[0].mxu0
        %2829 = vmatprep.mubr.f32.mxu0 0.0
        %v2830 = vand.u32 %v1664, 4294901760
        %2831 = vmatmul.mubr.f32.gmra.mrb[0].mxu0 %v2830
        %v2832 = vpop.f32.mrb[0].mxu0
        %v2833 = vadd.f32 %v2664, %v2832
        %v2834 = vpop.f32.mrb[0].mxu0
        %2835 = vmatprep.mubr.f32.mxu0 0.0
        %v2836 = vand.u32 %v1667, 4294901760
        %2837 = vmatmul.mubr.f32.gmra.mrb[0].mxu0 %v2836
        %v2838 = vpop.f32.mrb[0].mxu0
        %v2839 = vadd.f32 %v2670, %v2838
        %v2840 = vpop.f32.mrb[0].mxu0
        %2841 = vmatprep.mubr.f32.mxu0 0.0
        %v2842 = vand.u32 %v1670, 4294901760
        %2843 = vmatmul.mubr.f32.gmra.mrb[0].mxu0 %v2842
        %v2844 = vpop.f32.mrb[0].mxu0
        %v2845 = vadd.f32 %v2676, %v2844
        %v2846 = vpop.f32.mrb[0].mxu0
        %2847 = vmatprep.mubr.f32.mxu0 0.0
        %v2848 = vand.u32 %v1673, 4294901760
        %2849 = vmatmul.mubr.f32.gmra.mrb[0].mxu0 %v2848
        %v2850 = vpop.f32.mrb[0].mxu0
        %v2851 = vadd.f32 %v2682, %v2850
        %v2852 = vpop.f32.mrb[0].mxu0
        %2853 = vmatprep.mubr.f32.mxu0 0.0
        %v2854 = vand.u32 %v1676, 4294901760
        %2855 = vmatmul.mubr.f32.gmra.mrb[0].mxu0 %v2854
        %v2856 = vpop.f32.mrb[0].mxu0
        %v2857 = vadd.f32 %v2688, %v2856
        %v2858 = vpop.f32.mrb[0].mxu0
        %2859 = vdwg.mxu0
        %v2860 = vmul.f32 %v1497, %v2767
        %v2861 = vmul.f32 %v1503, %v2773
        %v2862 = vmul.f32 %v1509, %v2779
        %v2863 = vmul.f32 %v1515, %v2785
        %v2864 = vmul.f32 %v1521, %v2791
        %v2865 = vmul.f32 %v1527, %v2797
        %v2866 = vmul.f32 %v1533, %v2803
        %v2867 = vmul.f32 %v1539, %v2809
        %v2868 = vmul.f32 %v1545, %v2815
        %v2869 = vmul.f32 %v1551, %v2821
        %v2870 = vmul.f32 %v1557, %v2827
        %v2871 = vmul.f32 %v1563, %v2833
        %v2872 = vmul.f32 %v1569, %v2839
        %v2873 = vmul.f32 %v1575, %v2845
        %v2874 = vmul.f32 %v1581, %v2851
        %v2875 = vmul.f32 %v1587, %v2857
        %v2876 = vadd.f32 %v2860, %v2861
        %v2877 = vadd.f32 %v2876, %v2862
        %v2878 = vadd.f32 %v2877, %v2863
        %v2879 = vadd.f32 %v2878, %v2864
        %v2880 = vadd.f32 %v2879, %v2865
        %v2881 = vadd.f32 %v2880, %v2866
        %v2882 = vadd.f32 %v2881, %v2867
        %v2883 = vadd.f32 %v2882, %v2868
        %v2884 = vadd.f32 %v2883, %v2869
        %v2885 = vadd.f32 %v2884, %v2870
        %v2886 = vadd.f32 %v2885, %v2871
        %v2887 = vadd.f32 %v2886, %v2872
        %v2888 = vadd.f32 %v2887, %v2873
        %v2889 = vadd.f32 %v2888, %v2874
        %v2890 = vadd.f32 %v2889, %v2875
        %v2891 = vrot.slane %v2890, 4
        %v2892 = vadd.f32 %v2890, %v2891
        %v2893 = vrot.slane %v2892, 2
        %v2894 = vadd.f32 %v2892, %v2893
        %v2895 = vrot.slane %v2894, 1
        %v2896 = vadd.f32 %v2894, %v2895
        %v2897 = vxor.u32 %v2896, 2147483648
        %v2898 = vmul.f32 %v2897, 1.442695
        %v2899 = vpow.pop %v2898
        %v2900 = vadd.f32 %v2899, 1.0
        %v2901 = vrcp.pop %v2900
        %v2902 = vmul.f32 1.0, %v2901
        %2903 = vst [vmem:[%s248] sm:$0x1] %v2902
        %s2904 = sand.u32 %s124, 1
        %s2905 = scalar_lea.sflag [#allocation4], %s2904
        %s2906 = sand.u32 %s124, 1
        %s2907 = scalar_lea.vmem [#allocation8], %s2906
        // Predicated region
        $region49: #{tpu_custom_call.1} parent=35 // pred_check
          %p2908 = pneg %p134
        $region50: #{tpu_custom_call.1} parent=35 // pred_check_branch
          %2910 = sbr.rel (%p2908) target = $region52
        $region51: #{tpu_custom_call.1} parent=35 // pred_region
          %s2912 = ssub.s32 16, 16
          %2913 = vsyncadd %s2905, %s2912
          %s2914 = smul.addr %s22, 16
          %s2915 = scalar_lea.hbm %s4, %s2914
          %s2917 = sshll.u32 %s2907, 4
          %s2918 = int_to_ptr.vmem [resolvable:$true] %s2917
          %2920 = dma.vmem_to_hbm [thread:$0]  %s2918, 16, %s2915, %s2905
        $region52: #{tpu_custom_call.1} parent=35 // pred_fallthru
          _
      $region36: #{tpu_custom_call.1} parent=5 // pred_fallthru
        _
      %p2921 = scmp.le.s32.totalorder 2, %s17
      // Predicated region
      $region53: #{tpu_custom_call.1} parent=5 // pred_check
        %p2922 = pneg %p2921
      $region54: #{tpu_custom_call.1} parent=5 // pred_check_branch
        %2924 = sbr.rel (%p2922) target = $region56
      $region55: #{tpu_custom_call.1} parent=5 // pred_region
        %s2925 = ssub.s32 %s17, 2
        // Predicated region
        $region57: #{tpu_custom_call.1} parent=55 // pred_check
          %p2926 = pneg %p140
        $region58: #{tpu_custom_call.1} parent=55 // pred_check_branch
          %2928 = sbr.rel (%p2926) target = $region60
        $region59: #{tpu_custom_call.1} parent=55 // pred_region
          %s2929 = sand.u32 %s125, 1
          %s2930 = scalar_lea.sflag [#allocation4], %s2929
          %s2931 = sand.u32 %s125, 1
          %s2932 = scalar_lea.vmem [#allocation8], %s2931
          %2933 = dma.done %s2930, 16
        $region60: #{tpu_custom_call.1} parent=55 // pred_fallthru
          _
      $region56: #{tpu_custom_call.1} parent=5 // pred_fallthru
        _
    $region6: #{tpu_custom_call.1} parent=1 // loop_footer
      %s21 = sadd.s32 1, %s17
    $region7: #{tpu_custom_call.1} parent=1 // loop_footer_branch
      %16 = sbr.rel target = $region3
    $region8: #{tpu_custom_call.1} parent=1 // loop_exit
      _
    %2934 = vsyncpa [#allocation3], 1
    %s2935 = scalar_lea.sflag [#allocation3], 1
    %2936 = vsyncpa %s2935, 1
    %2937 = vsyncpa [#allocation6], 1
    %2938 = vsyncpa [#allocation4], 1
    %s2939 = scalar_lea.sflag [#allocation4], 1
    %2940 = vsyncpa %s2939, 1

</llo_original>
